<compile_context>
chip_gen: v7x
topology: tpu7x:2x2x1
jax: 0.10.0
libtpu: 0.0.40
codegen_flags: <defaults>
</compile_context>

<pallas_src>
import jax
import jax.numpy as jnp
from jax import lax
from jax.experimental import pallas as pl
from jax.experimental.pallas import tpu as pltpu


def _bottleneck_kernel(xm_ref, xt_ref, xb_ref,
                       w1_ref, w2_ref, w3_ref,
                       s1_ref, b1_ref, s2_ref, b2_ref, s3_ref, b3_ref,
                       o_ref):
    # xm_ref: (1, TH, W, Cin)  main spatial tile (also the residual)
    # xt_ref/xb_ref: (1, 1, W, Cin)  rows h*TH-1 / (h+1)*TH (clamped) = conv2 halo
    # w1_ref: (Cin, P)  bf16      1x1 conv1
    # w2_ref: (3, 3P, P) bf16     3x3 conv2, kx taps stacked along K
    # w3_ref: (P, Cout) bf16      1x1 conv3
    # s*/b*:  (1, C) f32          folded eval-mode BatchNorm scale / bias
    _, TH, W, Cin = xm_ref.shape
    P = w1_ref.shape[1]
    Cout = w3_ref.shape[1]
    R = TH * W             # rows in the output tile
    RE = (TH + 2) * W      # rows including the 1-row halo above and below

    h = pl.program_id(1)
    n_h = pl.num_programs(1)

    xm = xm_ref[0]                                                # (TH, W, Cin) f32
    x_ext = jnp.concatenate([xt_ref[0], xm, xb_ref[0]], axis=0)   # (TH+2, W, Cin)
    x_ext = x_ext.reshape(RE, Cin)

    # ---- conv1 (1x1) + bn1 + relu  (bf16 MXU, f32 epilogue) -----------------
    o1 = jnp.dot(x_ext.astype(jnp.bfloat16), w1_ref[...],
                 preferred_element_type=jnp.float32)              # (RE, P)
    o1 = jnp.maximum(o1 * s1_ref[...] + b1_ref[...], 0.0)

    # conv2's zero padding applies to the *post-relu* activation, so zero the
    # halo rows at the image top/bottom borders here (not on x).
    row = lax.broadcasted_iota(jnp.int32, (RE, 1), 0)
    top_keep = jnp.where(h == 0, 0.0, 1.0)
    bot_keep = jnp.where(h == n_h - 1, 0.0, 1.0)
    keep = (jnp.where(row < W, top_keep, 1.0) *
            jnp.where(row >= RE - W, bot_keep, 1.0))
    o1 = o1 * keep

    # ---- conv2 (3x3, stride 1, pad 1) + bn2 + relu --------------------------
    # Fold the kx taps into the contraction dim: per row build
    # [o1(x-1), o1(x), o1(x+1)] -> (RE, 3P), then one matmul per ky.
    colx = row % W
    zrow = jnp.zeros((1, P), jnp.float32)
    left = jnp.concatenate([zrow, o1[:RE - 1]], axis=0)           # o1 at x-1
    right = jnp.concatenate([o1[1:], zrow], axis=0)               # o1 at x+1
    left = jnp.where(colx == 0, 0.0, left)
    right = jnp.where(colx == W - 1, 0.0, right)
    stacked = jnp.concatenate([left, o1, right], axis=-1)         # (RE, 3P)
    stacked = stacked.astype(jnp.bfloat16)

    acc = jnp.dot(stacked[0:R], w2_ref[0], preferred_element_type=jnp.float32)
    acc = acc + jnp.dot(stacked[W:W + R], w2_ref[1],
                        preferred_element_type=jnp.float32)
    acc = acc + jnp.dot(stacked[2 * W:2 * W + R], w2_ref[2],
                        preferred_element_type=jnp.float32)
    o2 = jnp.maximum(acc * s2_ref[...] + b2_ref[...], 0.0)        # (R, P)

    # ---- conv3 (1x1) + bn3 + residual + relu --------------------------------
    o3 = jnp.dot(o2.astype(jnp.bfloat16), w3_ref[...],
                 preferred_element_type=jnp.float32)              # (R, Cout)
    o3 = o3 * s3_ref[...] + b3_ref[...]
    out = jnp.maximum(o3 + xm.reshape(R, Cin), 0.0)
    o_ref[0] = out.reshape(TH, W, Cout).astype(o_ref.dtype)


def bottleneck_pallas(x_nhwc, params, *, tile_h=8):
    """Fused Bottleneck forward. x_nhwc: (N, H, W, Cin) f32, Cin == 4*planes."""
    w1, w2, w3, s1, b1, s2, b2, s3, b3 = params
    N, H, W, Cin = x_nhwc.shape
    P = w1.shape[1]
    Cout = w3.shape[1]
    assert Cin == Cout == 4 * P, "residual add requires inplanes == planes * 4"

    TH = min(tile_h, H)
    assert H % TH == 0, "H must be divisible by the H-tile size"
    n_h = H // TH

    # bf16 weights for the MXU; fold the three kx taps of the 3x3 kernel into
    # the contraction dim: (3, 3, P, P) -> (3, 3P, P), rows = [kx=0, kx=1, kx=2].
    w1b = w1.astype(jnp.bfloat16)
    w2b = jnp.concatenate([w2[:, 0], w2[:, 1], w2[:, 2]],
                          axis=1).astype(jnp.bfloat16)
    w3b = w3.astype(jnp.bfloat16)

    def const(*shape):
        return pl.BlockSpec(shape, lambda n, h: (0,) * len(shape))

    out = pl.pallas_call(
        _bottleneck_kernel,
        out_shape=jax.ShapeDtypeStruct((N, H, W, Cout), x_nhwc.dtype),
        grid=(N, n_h),
        in_specs=[
            # main TH-row tile (also the residual)
            pl.BlockSpec((1, TH, W, Cin), lambda n, h: (n, h, 0, 0)),
            # 1-row halo above / below (clamped at borders; zero-masked in-kernel)
            pl.BlockSpec((1, 1, W, Cin),
                         lambda n, h: (n, jnp.maximum(h * TH - 1, 0), 0, 0)),
            pl.BlockSpec((1, 1, W, Cin),
                         lambda n, h: (n, jnp.minimum((h + 1) * TH, H - 1), 0, 0)),
            const(Cin, P),
            const(3, 3 * P, P),
            const(P, Cout),
            const(1, P), const(1, P),
            const(1, P), const(1, P),
            const(1, Cout), const(1, Cout),
        ],
        out_specs=pl.BlockSpec((1, TH, W, Cout), lambda n, h: (n, h, 0, 0)),
        compiler_params=pltpu.CompilerParams(
            dimension_semantics=("parallel", "parallel"),
            vmem_limit_bytes=32 * 1024 * 1024),
    )(x_nhwc, x_nhwc, x_nhwc, w1b, w2b, w3b, s1, b1, s2, b2, s3, b3)
    return out


def bottleneck_pallas_nchw(x_nchw, params, *, tile_h=8):
    """Drop-in (NCHW) interface matching the PyTorch module.  Prefer the NHWC
    entry point in real models: each transpose here is a full HBM-bound
    read+write of the activation tensor."""
    x = jnp.transpose(x_nchw, (0, 2, 3, 1))
    y = bottleneck_pallas(x, params, tile_h=tile_h)
    return jnp.transpose(y, (0, 3, 1, 2))


def _fold_bn(gamma, beta, mean, var, eps=1e-5):
    scale = gamma / jnp.sqrt(var + eps)
    bias = beta - mean * scale
    return scale.reshape(1, -1), bias.reshape(1, -1)


def _reference_nhwc(x, params):
    """Plain-JAX f32 reference (eval-mode BN), mirrors the PyTorch forward."""
    w1, w2, w3, s1, b1, s2, b2, s3, b3 = params
    dn = ("NHWC", "HWIO", "NHWC")
    relu = lambda v: jnp.maximum(v, 0.0)
    o = lax.conv_general_dilated(x, w1.reshape(1, 1, *w1.shape), (1, 1),
                                 "VALID", dimension_numbers=dn)
    o = relu(o * s1 + b1)
    o = lax.conv_general_dilated(o, w2, (1, 1), "SAME", dimension_numbers=dn)
    o = relu(o * s2 + b2)
    o = lax.conv_general_dilated(o, w3.reshape(1, 1, *w3.shape), (1, 1),
                                 "VALID", dimension_numbers=dn)
    o = o * s3 + b3
    return relu(o + x)


if __name__ == "__main__":
    # planes=32 -> inplanes = 4*planes = 128, so the stored output channel
    # (lane) dim is a dense multiple of 128 while staying small.
    N, planes, H, W = 2, 32, 16, 16
    inplanes = 4 * planes

    key = jax.random.PRNGKey(0)
    ks = jax.random.split(key, 8)

    x_nhwc = jax.random.normal(ks[0], (N, H, W, inplanes), jnp.float32)

    # Conv weights stored as (in, out) for 1x1 and (kh, kw, in, out) for 3x3
    # (== the torch Conv2d weights transposed).
    w1 = 0.1 * jax.random.normal(ks[1], (inplanes, planes), jnp.float32)
    w2 = 0.1 * jax.random.normal(ks[2], (3, 3, planes, planes), jnp.float32)
    w3 = 0.1 * jax.random.normal(ks[3], (planes, 4 * planes), jnp.float32)

    def bn_params(k, c):
        k1, k2, k3, k4 = jax.random.split(k, 4)
        gamma = 1.0 + 0.1 * jax.random.normal(k1, (c,), jnp.float32)
        beta = 0.1 * jax.random.normal(k2, (c,), jnp.float32)
        mean = 0.1 * jax.random.normal(k3, (c,), jnp.float32)
        var = jnp.abs(1.0 + 0.1 * jax.random.normal(k4, (c,), jnp.float32))
        return _fold_bn(gamma, beta, mean, var)

    s1, b1 = bn_params(ks[4], planes)
    s2, b2 = bn_params(ks[5], planes)
    s3, b3 = bn_params(ks[6], 4 * planes)
    params = (w1, w2, w3, s1, b1, s2, b2, s3, b3)

    y = bottleneck_pallas(x_nhwc, params)
    jax.block_until_ready(y)

    y_ref = _reference_nhwc(x_nhwc, params)
    assert y.shape == (N, H, W, inplanes)
    # bf16 MXU matmuls with f32 accumulation -> loosened tolerance vs f32 ref.
    assert jnp.allclose(y, y_ref, atol=5e-2, rtol=5e-2), \
        f"max err {jnp.max(jnp.abs(y - y_ref))}"

    # Drop-in NCHW interface (PyTorch layout) parity check.
    x_nchw = jnp.transpose(x_nhwc, (0, 3, 1, 2))
    y_nchw = bottleneck_pallas_nchw(x_nchw, params)
    jax.block_until_ready(y_nchw)
    assert jnp.allclose(y_nchw, jnp.transpose(y_ref, (0, 3, 1, 2)),
                        atol=5e-2, rtol=5e-2)

    print("KERNEL_OK")
</pallas_src>

<mosaic_0001>
module attributes {stable_mosaic.version = 11 : i64} {
  func.func @_bottleneck_kernel(%arg0: i32, %arg1: i32, %arg2: memref<1x8x16x128xf32, #tpu.memory_space<vmem>>, %arg3: memref<1x1x16x128xf32, #tpu.memory_space<vmem>>, %arg4: memref<1x1x16x128xf32, #tpu.memory_space<vmem>>, %arg5: memref<128x32xbf16, #tpu.memory_space<vmem>>, %arg6: memref<3x96x32xbf16, #tpu.memory_space<vmem>>, %arg7: memref<32x128xbf16, #tpu.memory_space<vmem>>, %arg8: memref<1x32xf32, #tpu.memory_space<vmem>>, %arg9: memref<1x32xf32, #tpu.memory_space<vmem>>, %arg10: memref<1x32xf32, #tpu.memory_space<vmem>>, %arg11: memref<1x32xf32, #tpu.memory_space<vmem>>, %arg12: memref<1x128xf32, #tpu.memory_space<vmem>>, %arg13: memref<1x128xf32, #tpu.memory_space<vmem>>, %arg14: memref<1x8x16x128xf32, #tpu.memory_space<vmem>>) attributes {dimension_semantics = [#tpu.dimension_semantics<parallel>, #tpu.dimension_semantics<parallel>], iteration_bounds = array<i64: 2, 2>, scalar_prefetch = 0 : i64, scratch_operands = 0 : i64, tpu.core_type = #tpu.core_type<tc>, window_params = [{transform_indices = @transform_0, window_bounds = array<i64: 1, 8, 16, 128>}, {transform_indices = @transform_1, window_bounds = array<i64: 1, 1, 16, 128>}, {transform_indices = @transform_2, window_bounds = array<i64: 1, 1, 16, 128>}, {pipeline_mode = #tpu.pipeline_mode<synchronous>, transform_indices = @transform_3, window_bounds = array<i64: 128, 32>}, {pipeline_mode = #tpu.pipeline_mode<synchronous>, transform_indices = @transform_4, window_bounds = array<i64: 3, 96, 32>}, {pipeline_mode = #tpu.pipeline_mode<synchronous>, transform_indices = @transform_5, window_bounds = array<i64: 32, 128>}, {pipeline_mode = #tpu.pipeline_mode<synchronous>, transform_indices = @transform_6, window_bounds = array<i64: 1, 32>}, {pipeline_mode = #tpu.pipeline_mode<synchronous>, transform_indices = @transform_7, window_bounds = array<i64: 1, 32>}, {pipeline_mode = #tpu.pipeline_mode<synchronous>, transform_indices = @transform_8, window_bounds = array<i64: 1, 32>}, {pipeline_mode = #tpu.pipeline_mode<synchronous>, transform_indices = @transform_9, window_bounds = array<i64: 1, 32>}, {pipeline_mode = #tpu.pipeline_mode<synchronous>, transform_indices = @transform_10, window_bounds = array<i64: 1, 128>}, {pipeline_mode = #tpu.pipeline_mode<synchronous>, transform_indices = @transform_11, window_bounds = array<i64: 1, 128>}, {transform_indices = @transform_12, window_bounds = array<i64: 1, 8, 16, 128>}]} {
    %c0 = arith.constant 0 : index
    %c0_0 = arith.constant 0 : index
    %c0_1 = arith.constant 0 : index
    %c0_2 = arith.constant 0 : index
    %0 = vector.load %arg2[%c0, %c0_0, %c0_1, %c0_2] : memref<1x8x16x128xf32, #tpu.memory_space<vmem>>, vector<1x8x16x128xf32>
    %1 = vector.shape_cast %0 : vector<1x8x16x128xf32> to vector<8x16x128xf32>
    %c0_3 = arith.constant 0 : index
    %c0_4 = arith.constant 0 : index
    %c0_5 = arith.constant 0 : index
    %c0_6 = arith.constant 0 : index
    %2 = vector.load %arg3[%c0_3, %c0_4, %c0_5, %c0_6] : memref<1x1x16x128xf32, #tpu.memory_space<vmem>>, vector<1x1x16x128xf32>
    %3 = vector.shape_cast %2 : vector<1x1x16x128xf32> to vector<1x16x128xf32>
    %c0_7 = arith.constant 0 : index
    %c0_8 = arith.constant 0 : index
    %c0_9 = arith.constant 0 : index
    %c0_10 = arith.constant 0 : index
    %4 = vector.load %arg4[%c0_7, %c0_8, %c0_9, %c0_10] : memref<1x1x16x128xf32, #tpu.memory_space<vmem>>, vector<1x1x16x128xf32>
    %5 = vector.shape_cast %4 : vector<1x1x16x128xf32> to vector<1x16x128xf32>
    %6 = tpu.concatenate %3, %1, %5 in 0 : vector<1x16x128xf32>, vector<8x16x128xf32>, vector<1x16x128xf32> -> vector<10x16x128xf32>
    %7 = vector.shape_cast %6 : vector<10x16x128xf32> to vector<160x128xf32>
    %8 = arith.truncf %7 : vector<160x128xf32> to vector<160x128xbf16>
    %c0_11 = arith.constant 0 : index
    %c0_12 = arith.constant 0 : index
    %9 = vector.load %arg5[%c0_11, %c0_12] : memref<128x32xbf16, #tpu.memory_space<vmem>>, vector<128x32xbf16>
    %cst = arith.constant dense<0.000000e+00> : vector<160x32xf32>
    %10 = tpu.matmul %8, %9, %cst {dimension_numbers = #tpu.dot_dimension_numbers<[1], [0], [0], [1], [0, 0, 1, 1], [], []>} : vector<160x128xbf16>, vector<128x32xbf16>, vector<160x32xf32> -> vector<160x32xf32>
    %c0_13 = arith.constant 0 : index
    %c0_14 = arith.constant 0 : index
    %11 = vector.load %arg8[%c0_13, %c0_14] : memref<1x32xf32, #tpu.memory_space<vmem>>, vector<1x32xf32>
    %12 = vector.broadcast %11 : vector<1x32xf32> to vector<160x32xf32>
    %13 = arith.mulf %10, %12 : vector<160x32xf32>
    %c0_15 = arith.constant 0 : index
    %c0_16 = arith.constant 0 : index
    %14 = vector.load %arg9[%c0_15, %c0_16] : memref<1x32xf32, #tpu.memory_space<vmem>>, vector<1x32xf32>
    %15 = vector.broadcast %14 : vector<1x32xf32> to vector<160x32xf32>
    %16 = arith.addf %13, %15 : vector<160x32xf32>
    %cst_17 = arith.constant 0.000000e+00 : f32
    %17 = vector.broadcast %cst_17 : f32 to vector<160x32xf32>
    %18 = arith.maximumf %16, %17 : vector<160x32xf32>
    %19 = tpu.iota {dimensions = array<i32: 0>} : vector<160x1xi32>
    %c0_i32 = arith.constant 0 : i32
    %20 = arith.cmpi eq, %arg1, %c0_i32 : i32
    %cst_18 = arith.constant 0.000000e+00 : f32
    %cst_19 = arith.constant 1.000000e+00 : f32
    %21 = arith.select %20, %cst_18, %cst_19 : f32
    %c1_i32 = arith.constant 1 : i32
    %22 = arith.cmpi eq, %arg1, %c1_i32 : i32
    %cst_20 = arith.constant 0.000000e+00 : f32
    %cst_21 = arith.constant 1.000000e+00 : f32
    %23 = arith.select %22, %cst_20, %cst_21 : f32
    %c16_i32 = arith.constant 16 : i32
    %24 = vector.broadcast %c16_i32 : i32 to vector<160x1xi32>
    %25 = arith.cmpi slt, %19, %24 : vector<160x1xi32>
    %cst_22 = arith.constant 1.000000e+00 : f32
    %26 = vector.broadcast %21 : f32 to vector<160x1xf32>
    %27 = vector.broadcast %cst_22 : f32 to vector<160x1xf32>
    %28 = arith.select %25, %26, %27 : vector<160x1xi1>, vector<160x1xf32>
    %c144_i32 = arith.constant 144 : i32
    %29 = vector.broadcast %c144_i32 : i32 to vector<160x1xi32>
    %30 = arith.cmpi sge, %19, %29 : vector<160x1xi32>
    %cst_23 = arith.constant 1.000000e+00 : f32
    %31 = vector.broadcast %23 : f32 to vector<160x1xf32>
    %32 = vector.broadcast %cst_23 : f32 to vector<160x1xf32>
    %33 = arith.select %30, %31, %32 : vector<160x1xi1>, vector<160x1xf32>
    %34 = arith.mulf %28, %33 : vector<160x1xf32>
    %35 = vector.broadcast %34 : vector<160x1xf32> to vector<160x32xf32>
    %36 = arith.mulf %18, %35 : vector<160x32xf32>
    %c16_i32_24 = arith.constant 16 : i32
    %c0_i32_25 = arith.constant 0 : i32
    %37 = arith.cmpi eq, %c16_i32_24, %c0_i32_25 : i32
    %c1_i32_26 = arith.constant 1 : i32
    %38 = arith.select %37, %c1_i32_26, %c16_i32_24 : i32
    %39 = vector.broadcast %38 : i32 to vector<160x1xi32>
    %40 = arith.remsi %19, %39 : vector<160x1xi32>
    %c0_i32_27 = arith.constant 0 : i32
    %41 = vector.broadcast %c0_i32_27 : i32 to vector<160x1xi32>
    %42 = arith.cmpi ne, %40, %41 : vector<160x1xi32>
    %c0_i32_28 = arith.constant 0 : i32
    %43 = vector.broadcast %c0_i32_28 : i32 to vector<160x1xi32>
    %44 = arith.cmpi slt, %40, %43 : vector<160x1xi32>
    %c0_i32_29 = arith.constant 0 : i32
    %45 = arith.cmpi slt, %38, %c0_i32_29 : i32
    %46 = vector.broadcast %45 : i1 to vector<160x1xi1>
    %47 = vector.broadcast %46 : vector<160x1xi1> to vector<160x1xi1>
    %48 = arith.xori %44, %47 : vector<160x1xi1>
    %49 = arith.andi %48, %42 : vector<160x1xi1>
    %50 = vector.broadcast %38 : i32 to vector<160x1xi32>
    %51 = arith.addi %40, %50 : vector<160x1xi32>
    %52 = arith.select %49, %51, %40 : vector<160x1xi1>, vector<160x1xi32>
    %cst_30 = arith.constant 0.000000e+00 : f32
    %53 = vector.broadcast %cst_30 : f32 to vector<1x32xf32>
    %54 = vector.extract_strided_slice %36 {offsets = [0, 0], sizes = [159, 32], strides = [1, 1]} : vector<160x32xf32> to vector<159x32xf32>
    %55 = tpu.concatenate %53, %54 in 0 : vector<1x32xf32>, vector<159x32xf32> -> vector<160x32xf32>
    %56 = vector.extract_strided_slice %36 {offsets = [1, 0], sizes = [159, 32], strides = [1, 1]} : vector<160x32xf32> to vector<159x32xf32>
    %57 = tpu.concatenate %56, %53 in 0 : vector<159x32xf32>, vector<1x32xf32> -> vector<160x32xf32>
    %c0_i32_31 = arith.constant 0 : i32
    %58 = vector.broadcast %c0_i32_31 : i32 to vector<160x1xi32>
    %59 = arith.cmpi eq, %52, %58 : vector<160x1xi32>
    %cst_32 = arith.constant 0.000000e+00 : f32
    %60 = vector.shape_cast %59 : vector<160x1xi1> to vector<160x1xi1>
    %61 = vector.broadcast %60 : vector<160x1xi1> to vector<160x32xi1>
    %62 = vector.broadcast %cst_32 : f32 to vector<160x32xf32>
    %63 = arith.select %61, %62, %55 : vector<160x32xi1>, vector<160x32xf32>
    %c15_i32 = arith.constant 15 : i32
    %64 = vector.broadcast %c15_i32 : i32 to vector<160x1xi32>
    %65 = arith.cmpi eq, %52, %64 : vector<160x1xi32>
    %cst_33 = arith.constant 0.000000e+00 : f32
    %66 = vector.shape_cast %65 : vector<160x1xi1> to vector<160x1xi1>
    %67 = vector.broadcast %66 : vector<160x1xi1> to vector<160x32xi1>
    %68 = vector.broadcast %cst_33 : f32 to vector<160x32xf32>
    %69 = arith.select %67, %68, %57 : vector<160x32xi1>, vector<160x32xf32>
    %70 = tpu.concatenate %63, %36, %69 in 1 : vector<160x32xf32>, vector<160x32xf32>, vector<160x32xf32> -> vector<160x96xf32>
    %71 = arith.truncf %70 : vector<160x96xf32> to vector<160x96xbf16>
    %72 = vector.extract_strided_slice %71 {offsets = [0, 0], sizes = [128, 96], strides = [1, 1]} : vector<160x96xbf16> to vector<128x96xbf16>
    %c0_34 = arith.constant 0 : index
    %c0_35 = arith.constant 0 : index
    %c0_36 = arith.constant 0 : index
    %73 = vector.load %arg6[%c0_34, %c0_35, %c0_36] : memref<3x96x32xbf16, #tpu.memory_space<vmem>>, vector<1x96x32xbf16>
    %74 = vector.shape_cast %73 : vector<1x96x32xbf16> to vector<96x32xbf16>
    %cst_37 = arith.constant dense<0.000000e+00> : vector<128x32xf32>
    %75 = tpu.matmul %72, %74, %cst_37 {dimension_numbers = #tpu.dot_dimension_numbers<[1], [0], [0], [1], [0, 0, 1, 1], [], []>} : vector<128x96xbf16>, vector<96x32xbf16>, vector<128x32xf32> -> vector<128x32xf32>
    %76 = vector.extract_strided_slice %71 {offsets = [16, 0], sizes = [128, 96], strides = [1, 1]} : vector<160x96xbf16> to vector<128x96xbf16>
    %c1 = arith.constant 1 : index
    %c0_38 = arith.constant 0 : index
    %c0_39 = arith.constant 0 : index
    %77 = vector.load %arg6[%c1, %c0_38, %c0_39] : memref<3x96x32xbf16, #tpu.memory_space<vmem>>, vector<1x96x32xbf16>
    %78 = vector.shape_cast %77 : vector<1x96x32xbf16> to vector<96x32xbf16>
    %cst_40 = arith.constant dense<0.000000e+00> : vector<128x32xf32>
    %79 = tpu.matmul %76, %78, %cst_40 {dimension_numbers = #tpu.dot_dimension_numbers<[1], [0], [0], [1], [0, 0, 1, 1], [], []>} : vector<128x96xbf16>, vector<96x32xbf16>, vector<128x32xf32> -> vector<128x32xf32>
    %80 = arith.addf %75, %79 : vector<128x32xf32>
    %81 = vector.extract_strided_slice %71 {offsets = [32, 0], sizes = [128, 96], strides = [1, 1]} : vector<160x96xbf16> to vector<128x96xbf16>
    %c2 = arith.constant 2 : index
    %c0_41 = arith.constant 0 : index
    %c0_42 = arith.constant 0 : index
    %82 = vector.load %arg6[%c2, %c0_41, %c0_42] : memref<3x96x32xbf16, #tpu.memory_space<vmem>>, vector<1x96x32xbf16>
    %83 = vector.shape_cast %82 : vector<1x96x32xbf16> to vector<96x32xbf16>
    %cst_43 = arith.constant dense<0.000000e+00> : vector<128x32xf32>
    %84 = tpu.matmul %81, %83, %cst_43 {dimension_numbers = #tpu.dot_dimension_numbers<[1], [0], [0], [1], [0, 0, 1, 1], [], []>} : vector<128x96xbf16>, vector<96x32xbf16>, vector<128x32xf32> -> vector<128x32xf32>
    %85 = arith.addf %80, %84 : vector<128x32xf32>
    %c0_44 = arith.constant 0 : index
    %c0_45 = arith.constant 0 : index
    %86 = vector.load %arg10[%c0_44, %c0_45] : memref<1x32xf32, #tpu.memory_space<vmem>>, vector<1x32xf32>
    %87 = vector.broadcast %86 : vector<1x32xf32> to vector<128x32xf32>
    %88 = arith.mulf %85, %87 : vector<128x32xf32>
    %c0_46 = arith.constant 0 : index
    %c0_47 = arith.constant 0 : index
    %89 = vector.load %arg11[%c0_46, %c0_47] : memref<1x32xf32, #tpu.memory_space<vmem>>, vector<1x32xf32>
    %90 = vector.broadcast %89 : vector<1x32xf32> to vector<128x32xf32>
    %91 = arith.addf %88, %90 : vector<128x32xf32>
    %cst_48 = arith.constant 0.000000e+00 : f32
    %92 = vector.broadcast %cst_48 : f32 to vector<128x32xf32>
    %93 = arith.maximumf %91, %92 : vector<128x32xf32>
    %94 = arith.truncf %93 : vector<128x32xf32> to vector<128x32xbf16>
    %c0_49 = arith.constant 0 : index
    %c0_50 = arith.constant 0 : index
    %95 = vector.load %arg7[%c0_49, %c0_50] : memref<32x128xbf16, #tpu.memory_space<vmem>>, vector<32x128xbf16>
    %cst_51 = arith.constant dense<0.000000e+00> : vector<128x128xf32>
    %96 = tpu.matmul %94, %95, %cst_51 {dimension_numbers = #tpu.dot_dimension_numbers<[1], [0], [0], [1], [0, 0, 1, 1], [], []>} : vector<128x32xbf16>, vector<32x128xbf16>, vector<128x128xf32> -> vector<128x128xf32>
    %c0_52 = arith.constant 0 : index
    %c0_53 = arith.constant 0 : index
    %97 = vector.load %arg12[%c0_52, %c0_53] : memref<1x128xf32, #tpu.memory_space<vmem>>, vector<1x128xf32>
    %98 = vector.broadcast %97 : vector<1x128xf32> to vector<128x128xf32>
    %99 = arith.mulf %96, %98 : vector<128x128xf32>
    %c0_54 = arith.constant 0 : index
    %c0_55 = arith.constant 0 : index
    %100 = vector.load %arg13[%c0_54, %c0_55] : memref<1x128xf32, #tpu.memory_space<vmem>>, vector<1x128xf32>
    %101 = vector.broadcast %100 : vector<1x128xf32> to vector<128x128xf32>
    %102 = arith.addf %99, %101 : vector<128x128xf32>
    %103 = vector.shape_cast %1 : vector<8x16x128xf32> to vector<128x128xf32>
    %104 = arith.addf %102, %103 : vector<128x128xf32>
    %cst_56 = arith.constant 0.000000e+00 : f32
    %105 = vector.broadcast %cst_56 : f32 to vector<128x128xf32>
    %106 = arith.maximumf %104, %105 : vector<128x128xf32>
    %107 = vector.shape_cast %106 : vector<128x128xf32> to vector<8x16x128xf32>
    %c0_57 = arith.constant 0 : index
    %c0_58 = arith.constant 0 : index
    %c0_59 = arith.constant 0 : index
    %c0_60 = arith.constant 0 : index
    %108 = vector.load %arg14[%c0_57, %c0_58, %c0_59, %c0_60] : memref<1x8x16x128xf32, #tpu.memory_space<vmem>>, vector<1x8x16x128xf32>
    %109 = vector.shape_cast %108 : vector<1x8x16x128xf32> to vector<8x16x128xf32>
    %110 = vector.shape_cast %107 : vector<8x16x128xf32> to vector<1x8x16x128xf32>
    tpu.vector_store %arg14[%c0_57, %c0_58, %c0_59, %c0_60], %110 {strides = array<i32>} : memref<1x8x16x128xf32, #tpu.memory_space<vmem>>, vector<1x8x16x128xf32>,
    return
  }
  func.func @transform_0(%arg0: i32, %arg1: i32) -> (i32, i32, i32, i32) {
    %c0_i32 = arith.constant 0 : i32
    %c0_i32_0 = arith.constant 0 : i32
    %c0_i32_1 = arith.constant 0 : i32
    return %arg0, %arg1, %c0_i32, %c0_i32_0 : i32, i32, i32, i32
  }
  func.func @transform_1(%arg0: i32, %arg1: i32) -> (i32, i32, i32, i32) {
    %c8_i32 = arith.constant 8 : i32
    %0 = arith.muli %arg1, %c8_i32 : i32
    %c1_i32 = arith.constant 1 : i32
    %1 = arith.subi %0, %c1_i32 : i32
    %c0_i32 = arith.constant 0 : i32
    %2 = arith.maxsi %1, %c0_i32 : i32
    %c0_i32_0 = arith.constant 0 : i32
    %c0_i32_1 = arith.constant 0 : i32
    %c0_i32_2 = arith.constant 0 : i32
    return %arg0, %2, %c0_i32_0, %c0_i32_1 : i32, i32, i32, i32
  }
  func.func @transform_2(%arg0: i32, %arg1: i32) -> (i32, i32, i32, i32) {
    %c1_i32 = arith.constant 1 : i32
    %0 = arith.addi %arg1, %c1_i32 : i32
    %c8_i32 = arith.constant 8 : i32
    %1 = arith.muli %0, %c8_i32 : i32
    %c15_i32 = arith.constant 15 : i32
    %2 = arith.minsi %1, %c15_i32 : i32
    %c0_i32 = arith.constant 0 : i32
    %c0_i32_0 = arith.constant 0 : i32
    %c0_i32_1 = arith.constant 0 : i32
    return %arg0, %2, %c0_i32, %c0_i32_0 : i32, i32, i32, i32
  }
  func.func @transform_3(%arg0: i32, %arg1: i32) -> (i32, i32) {
    %c0_i32 = arith.constant 0 : i32
    %c0_i32_0 = arith.constant 0 : i32
    %c0_i32_1 = arith.constant 0 : i32
    return %c0_i32, %c0_i32_0 : i32, i32
  }
  func.func @transform_4(%arg0: i32, %arg1: i32) -> (i32, i32, i32) {
    %c0_i32 = arith.constant 0 : i32
    %c0_i32_0 = arith.constant 0 : i32
    %c0_i32_1 = arith.constant 0 : i32
    %c0_i32_2 = arith.constant 0 : i32
    return %c0_i32, %c0_i32_0, %c0_i32_1 : i32, i32, i32
  }
  func.func @transform_5(%arg0: i32, %arg1: i32) -> (i32, i32) {
    %c0_i32 = arith.constant 0 : i32
    %c0_i32_0 = arith.constant 0 : i32
    %c0_i32_1 = arith.constant 0 : i32
    return %c0_i32, %c0_i32_0 : i32, i32
  }
  func.func @transform_6(%arg0: i32, %arg1: i32) -> (i32, i32) {
    %c0_i32 = arith.constant 0 : i32
    %c0_i32_0 = arith.constant 0 : i32
    %c0_i32_1 = arith.constant 0 : i32
    return %c0_i32, %c0_i32_0 : i32, i32
  }
  func.func @transform_7(%arg0: i32, %arg1: i32) -> (i32, i32) {
    %c0_i32 = arith.constant 0 : i32
    %c0_i32_0 = arith.constant 0 : i32
    %c0_i32_1 = arith.constant 0 : i32
    return %c0_i32, %c0_i32_0 : i32, i32
  }
  func.func @transform_8(%arg0: i32, %arg1: i32) -> (i32, i32) {
    %c0_i32 = arith.constant 0 : i32
    %c0_i32_0 = arith.constant 0 : i32
    %c0_i32_1 = arith.constant 0 : i32
    return %c0_i32, %c0_i32_0 : i32, i32
  }
  func.func @transform_9(%arg0: i32, %arg1: i32) -> (i32, i32) {
    %c0_i32 = arith.constant 0 : i32
    %c0_i32_0 = arith.constant 0 : i32
    %c0_i32_1 = arith.constant 0 : i32
    return %c0_i32, %c0_i32_0 : i32, i32
  }
  func.func @transform_10(%arg0: i32, %arg1: i32) -> (i32, i32) {
    %c0_i32 = arith.constant 0 : i32
    %c0_i32_0 = arith.constant 0 : i32
    %c0_i32_1 = arith.constant 0 : i32
    return %c0_i32, %c0_i32_0 : i32, i32
  }
  func.func @transform_11(%arg0: i32, %arg1: i32) -> (i32, i32) {
    %c0_i32 = arith.constant 0 : i32
    %c0_i32_0 = arith.constant 0 : i32
    %c0_i32_1 = arith.constant 0 : i32
    return %c0_i32, %c0_i32_0 : i32, i32
  }
  func.func @transform_12(%arg0: i32, %arg1: i32) -> (i32, i32, i32, i32) {
    %c0_i32 = arith.constant 0 : i32
    %c0_i32_0 = arith.constant 0 : i32
    %c0_i32_1 = arith.constant 0 : i32
    return %arg0, %arg1, %c0_i32, %c0_i32_0 : i32, i32, i32, i32
  }
}

</mosaic_0001>

<llo_original>
// kernel: tpu_custom_call.1
$region0: #{tpu_custom_call.1}
  #allocation0 [shape = 'u32[]', space=smem, size = 0x4, offset = 0x4, fixed_abs, tag = 'smem constant byte address 0x4 - core index']
  #allocation1 [shape = 'u32[144,128]{1,0:T(1,128)}', space=vmem, size = 0x12000, scoped, tag = 'internal scratch']
  %s0 = inlined_call_operand.hbm [shape: f32[2,16,16,128], index: 0, kind: input, shape index: {}]
  %s1 = inlined_call_operand.hbm [shape: f32[2,16,16,128], index: 1, kind: input, shape index: {}]
  %s2 = inlined_call_operand.hbm [shape: f32[2,16,16,128], index: 2, kind: input, shape index: {}]
  %s3 = inlined_call_operand.vmem [shape: bf16[128,32], index: 3, kind: input, shape index: {}]
  %s4 = inlined_call_operand.vmem [shape: bf16[3,96,32], index: 4, kind: input, shape index: {}]
  %s5 = inlined_call_operand.vmem [shape: bf16[32,128], index: 5, kind: input, shape index: {}]
  %s6 = inlined_call_operand.vmem [shape: f32[1,32], index: 6, kind: input, shape index: {}]
  %s7 = inlined_call_operand.vmem [shape: f32[1,32], index: 7, kind: input, shape index: {}]
  %s8 = inlined_call_operand.vmem [shape: f32[1,32], index: 8, kind: input, shape index: {}]
  %s9 = inlined_call_operand.vmem [shape: f32[1,32], index: 9, kind: input, shape index: {}]
  %s10 = inlined_call_operand.vmem [shape: f32[1,128], index: 10, kind: input, shape index: {}]
  %s11 = inlined_call_operand.vmem [shape: f32[1,128], index: 11, kind: input, shape index: {}]
  %s12 = inlined_call_operand.hbm [shape: f32[2,16,16,128], index: 12, kind: output, shape index: {}]
  %s13 = sld [smem:[#allocation0]]
  $region93: #{tpu_custom_call.1} parent=0
    _
  %s15 = ssub.s32 1, %s13
  %s16 = scalar_select 0, %s15, %s13
  $region1: #{tpu_custom_call.1} parent=0
    #allocation2 [shape = 'u8[131072]{0}', space=vmem, size = 0x20000, scoped, tag = 'input window, operand 0']
    #allocation3 [shape = 's32[2]{0}', space=sflag, size = 0x8, scoped, tag = 'scoped memory for tpu_custom_call.1']
    #allocation4 [shape = 's32[2]{0}', space=sflag, size = 0x8, scoped, tag = 'scoped memory for tpu_custom_call.1']
    #allocation5 [shape = 'u8[16384]{0}', space=vmem, size = 0x4000, scoped, tag = 'input window, operand 1']
    #allocation6 [shape = 's32[2]{0}', space=sflag, size = 0x8, scoped, tag = 'scoped memory for tpu_custom_call.1']
    #allocation7 [shape = 'u8[16384]{0}', space=vmem, size = 0x4000, scoped, tag = 'input window, operand 2']
    #allocation8 [shape = 'u8[131072]{0}', space=vmem, size = 0x20000, scoped, tag = 'output window, operand 0']
    %17 = vsyncpa [#allocation3], 0
    %s18 = scalar_lea.sflag [#allocation3], 1
    %19 = vsyncpa %s18, 0
    %20 = vsyncpa [#allocation6], 0
    %s21 = scalar_lea.sflag [#allocation6], 1
    %22 = vsyncpa %s21, 0
    %23 = vsyncpa [#allocation4], 0
    %s24 = scalar_lea.sflag [#allocation4], 1
    %25 = vsyncpa %s24, 0
    loop: start=0, step=1, limit=6
    $region2: #{tpu_custom_call.1} parent=1 // loop_pre_header
      _
    $region3: #{tpu_custom_call.1} parent=1 // loop_header
      %s27 = sphi 0, %s31
      %p28 = scmp.ge.s32.totalorder %s27, 6
      %s34 = sphi 0, %s46
      %s35 = sphi 0, %s42
      %s36 = sphi 0, %s34
      %s37 = sphi 0, %s35
      %s38 = sphi 0, %s36
      %s39 = sphi 0, %s37
      %s51 = sphi 0, %s53
      %s54 = sphi 0, %s51
      %s55 = sphi 0, %s54
      %s71 = sphi 0, %s55
      %s87 = sphi 0, %s89
      %s90 = sphi 0, %s87
      %s91 = sphi 0, %s90
      %s107 = sphi 0, %s91
      %s123 = sphi 0, %s125
      %s126 = sphi 0, %s123
      %s127 = sphi 0, %s126
      %s143 = sphi 0, %s127
      %s147 = sphi 0, %s147
      %s149 = sphi 0, %s147
      %s150 = sphi 0, %s149
      %s164 = sphi 0, %s150
      %s168 = sphi 0, %s168
      %s170 = sphi 0, %s168
      %s171 = sphi 0, %s170
      %s185 = sphi 0, %s171
      %s189 = sphi 0, %s189
      %s191 = sphi 0, %s189
      %s192 = sphi 0, %s191
      %s206 = sphi 0, %s192
      %s210 = sphi 0, %s210
      %s212 = sphi 0, %s210
      %s213 = sphi 0, %s212
      %s227 = sphi 0, %s213
      %s231 = sphi 0, %s231
      %s233 = sphi 0, %s231
      %s234 = sphi 0, %s233
      %s248 = sphi 0, %s234
      %s252 = sphi 0, %s252
      %s254 = sphi 0, %s252
      %s255 = sphi 0, %s254
      %s269 = sphi 0, %s255
      %s273 = sphi 0, %s273
      %s275 = sphi 0, %s273
      %s276 = sphi 0, %s275
      %s290 = sphi 0, %s276
      %s294 = sphi 0, %s294
      %s296 = sphi 0, %s294
      %s297 = sphi 0, %s296
      %s311 = sphi 0, %s297
      %s315 = sphi 0, %s315
      %s317 = sphi 0, %s315
      %s318 = sphi 0, %s317
      %s332 = sphi 0, %s318
      %s340 = sphi 0, %s342
      %s343 = sphi 0, %s340
      %s344 = sphi 0, %s343
      %s360 = sphi 0, %s344
    $region4: #{tpu_custom_call.1} parent=1 // loop_header_branch
      %30 = sbr.rel (%p28) target = $region8
    $region5: #{tpu_custom_call.1} parent=1 // loop_body
      %s32 = ssub.s32 %s27, 1
      %s33 = ssub.s32 %s27, 2
      %s40 = sadd.s32 1, %s35
      %p41 = scmp.ge.s32.totalorder %s40, 2
      %s42 = scalar_select %p41, 0, %s40
      %s43 = sadd.s32 1, %s34
      %s44 = scalar_select %p41, %s43, %s34
      %p45 = scmp.ge.s32.totalorder %s44, 2
      %s46 = scalar_select %p45, 0, %s44
      %s47 = ssub.s32 %s34, %s46
      %s48 = ssub.s32 %s35, %s42
      %s49 = sor.u32 %s47, %s48
      %p50 = scmp.eq.s32.totalorder %s49, 0
      %s52 = sadd.s32 %s51, 1
      %s53 = scalar_select %p50, %s51, %s52
      %p56 = pneg %p50
      %p57 = scmp.eq.s32.totalorder %s27, 3
      %p58 = por %p56, %p57
      %p59 = scmp.ne.s32.totalorder %s51, %s54
      %p60 = scmp.eq.s32.totalorder %s27, 0
      %p61 = por %p59, %p60
      %p62 = scmp.ne.s32.totalorder %s51, %s54
      %p63 = scmp.eq.s32.totalorder %s32, 3
      %p64 = por %p62, %p63
      %p65 = scmp.ne.s32.totalorder %s54, %s55
      %p66 = scmp.eq.s32.totalorder %s32, 0
      %p67 = por %p65, %p66
      %p68 = scmp.ne.s32.totalorder %s54, %s55
      %p69 = scmp.eq.s32.totalorder %s33, 3
      %p70 = por %p68, %p69
      %p72 = scmp.ne.s32.totalorder %s55, %s71
      %p73 = scmp.eq.s32.totalorder %s33, 0
      %p74 = por %p72, %p73
      %s75 = smul.u32 %s35, 8
      %s76 = ssub.s32 %s75, 1
      %p77 = scmp.gt.s32.totalorder %s76, 0
      %s78 = scalar_select %p77, %s76, 0
      %s79 = smul.u32 %s42, 8
      %s80 = ssub.s32 %s79, 1
      %p81 = scmp.gt.s32.totalorder %s80, 0
      %s82 = scalar_select %p81, %s80, 0
      %s83 = ssub.s32 %s34, %s46
      %s84 = ssub.s32 %s78, %s82
      %s85 = sor.u32 %s83, %s84
      %p86 = scmp.eq.s32.totalorder %s85, 0
      %s88 = sadd.s32 %s87, 1
      %s89 = scalar_select %p86, %s87, %s88
      %p92 = pneg %p86
      %p93 = scmp.eq.s32.totalorder %s27, 3
      %p94 = por %p92, %p93
      %p95 = scmp.ne.s32.totalorder %s87, %s90
      %p96 = scmp.eq.s32.totalorder %s27, 0
      %p97 = por %p95, %p96
      %p98 = scmp.ne.s32.totalorder %s87, %s90
      %p99 = scmp.eq.s32.totalorder %s32, 3
      %p100 = por %p98, %p99
      %p101 = scmp.ne.s32.totalorder %s90, %s91
      %p102 = scmp.eq.s32.totalorder %s32, 0
      %p103 = por %p101, %p102
      %p104 = scmp.ne.s32.totalorder %s90, %s91
      %p105 = scmp.eq.s32.totalorder %s33, 3
      %p106 = por %p104, %p105
      %p108 = scmp.ne.s32.totalorder %s91, %s107
      %p109 = scmp.eq.s32.totalorder %s33, 0
      %p110 = por %p108, %p109
      %s111 = sadd.s32 %s35, 1
      %s112 = smul.u32 %s111, 8
      %p113 = scmp.lt.s32.totalorder %s112, 15
      %s114 = scalar_select %p113, %s112, 15
      %s115 = sadd.s32 %s42, 1
      %s116 = smul.u32 %s115, 8
      %p117 = scmp.lt.s32.totalorder %s116, 15
      %s118 = scalar_select %p117, %s116, 15
      %s119 = ssub.s32 %s34, %s46
      %s120 = ssub.s32 %s114, %s118
      %s121 = sor.u32 %s119, %s120
      %p122 = scmp.eq.s32.totalorder %s121, 0
      %s124 = sadd.s32 %s123, 1
      %s125 = scalar_select %p122, %s123, %s124
      %p128 = pneg %p122
      %p129 = scmp.eq.s32.totalorder %s27, 3
      %p130 = por %p128, %p129
      %p131 = scmp.ne.s32.totalorder %s123, %s126
      %p132 = scmp.eq.s32.totalorder %s27, 0
      %p133 = por %p131, %p132
      %p134 = scmp.ne.s32.totalorder %s123, %s126
      %p135 = scmp.eq.s32.totalorder %s32, 3
      %p136 = por %p134, %p135
      %p137 = scmp.ne.s32.totalorder %s126, %s127
      %p138 = scmp.eq.s32.totalorder %s32, 0
      %p139 = por %p137, %p138
      %p140 = scmp.ne.s32.totalorder %s126, %s127
      %p141 = scmp.eq.s32.totalorder %s33, 3
      %p142 = por %p140, %p141
      %p144 = scmp.ne.s32.totalorder %s127, %s143
      %p145 = scmp.eq.s32.totalorder %s33, 0
      %p146 = por %p144, %p145
      %s148 = sadd.s32 %s147, 1
      %p151 = scmp.eq.s32.totalorder %s27, 3
      %p152 = scmp.ne.s32.totalorder %s147, %s149
      %p153 = scmp.eq.s32.totalorder %s27, 0
      %p154 = por %p152, %p153
      %p155 = scmp.ne.s32.totalorder %s147, %s149
      %p156 = scmp.eq.s32.totalorder %s32, 3
      %p157 = por %p155, %p156
      %p158 = scmp.ne.s32.totalorder %s149, %s150
      %p159 = scmp.eq.s32.totalorder %s32, 0
      %p160 = por %p158, %p159
      %p161 = scmp.ne.s32.totalorder %s149, %s150
      %p162 = scmp.eq.s32.totalorder %s33, 3
      %p163 = por %p161, %p162
      %p165 = scmp.ne.s32.totalorder %s150, %s164
      %p166 = scmp.eq.s32.totalorder %s33, 0
      %p167 = por %p165, %p166
      %s169 = sadd.s32 %s168, 1
      %p172 = scmp.eq.s32.totalorder %s27, 3
      %p173 = scmp.ne.s32.totalorder %s168, %s170
      %p174 = scmp.eq.s32.totalorder %s27, 0
      %p175 = por %p173, %p174
      %p176 = scmp.ne.s32.totalorder %s168, %s170
      %p177 = scmp.eq.s32.totalorder %s32, 3
      %p178 = por %p176, %p177
      %p179 = scmp.ne.s32.totalorder %s170, %s171
      %p180 = scmp.eq.s32.totalorder %s32, 0
      %p181 = por %p179, %p180
      %p182 = scmp.ne.s32.totalorder %s170, %s171
      %p183 = scmp.eq.s32.totalorder %s33, 3
      %p184 = por %p182, %p183
      %p186 = scmp.ne.s32.totalorder %s171, %s185
      %p187 = scmp.eq.s32.totalorder %s33, 0
      %p188 = por %p186, %p187
      %s190 = sadd.s32 %s189, 1
      %p193 = scmp.eq.s32.totalorder %s27, 3
      %p194 = scmp.ne.s32.totalorder %s189, %s191
      %p195 = scmp.eq.s32.totalorder %s27, 0
      %p196 = por %p194, %p195
      %p197 = scmp.ne.s32.totalorder %s189, %s191
      %p198 = scmp.eq.s32.totalorder %s32, 3
      %p199 = por %p197, %p198
      %p200 = scmp.ne.s32.totalorder %s191, %s192
      %p201 = scmp.eq.s32.totalorder %s32, 0
      %p202 = por %p200, %p201
      %p203 = scmp.ne.s32.totalorder %s191, %s192
      %p204 = scmp.eq.s32.totalorder %s33, 3
      %p205 = por %p203, %p204
      %p207 = scmp.ne.s32.totalorder %s192, %s206
      %p208 = scmp.eq.s32.totalorder %s33, 0
      %p209 = por %p207, %p208
      %s211 = sadd.s32 %s210, 1
      %p214 = scmp.eq.s32.totalorder %s27, 3
      %p215 = scmp.ne.s32.totalorder %s210, %s212
      %p216 = scmp.eq.s32.totalorder %s27, 0
      %p217 = por %p215, %p216
      %p218 = scmp.ne.s32.totalorder %s210, %s212
      %p219 = scmp.eq.s32.totalorder %s32, 3
      %p220 = por %p218, %p219
      %p221 = scmp.ne.s32.totalorder %s212, %s213
      %p222 = scmp.eq.s32.totalorder %s32, 0
      %p223 = por %p221, %p222
      %p224 = scmp.ne.s32.totalorder %s212, %s213
      %p225 = scmp.eq.s32.totalorder %s33, 3
      %p226 = por %p224, %p225
      %p228 = scmp.ne.s32.totalorder %s213, %s227
      %p229 = scmp.eq.s32.totalorder %s33, 0
      %p230 = por %p228, %p229
      %s232 = sadd.s32 %s231, 1
      %p235 = scmp.eq.s32.totalorder %s27, 3
      %p236 = scmp.ne.s32.totalorder %s231, %s233
      %p237 = scmp.eq.s32.totalorder %s27, 0
      %p238 = por %p236, %p237
      %p239 = scmp.ne.s32.totalorder %s231, %s233
      %p240 = scmp.eq.s32.totalorder %s32, 3
      %p241 = por %p239, %p240
      %p242 = scmp.ne.s32.totalorder %s233, %s234
      %p243 = scmp.eq.s32.totalorder %s32, 0
      %p244 = por %p242, %p243
      %p245 = scmp.ne.s32.totalorder %s233, %s234
      %p246 = scmp.eq.s32.totalorder %s33, 3
      %p247 = por %p245, %p246
      %p249 = scmp.ne.s32.totalorder %s234, %s248
      %p250 = scmp.eq.s32.totalorder %s33, 0
      %p251 = por %p249, %p250
      %s253 = sadd.s32 %s252, 1
      %p256 = scmp.eq.s32.totalorder %s27, 3
      %p257 = scmp.ne.s32.totalorder %s252, %s254
      %p258 = scmp.eq.s32.totalorder %s27, 0
      %p259 = por %p257, %p258
      %p260 = scmp.ne.s32.totalorder %s252, %s254
      %p261 = scmp.eq.s32.totalorder %s32, 3
      %p262 = por %p260, %p261
      %p263 = scmp.ne.s32.totalorder %s254, %s255
      %p264 = scmp.eq.s32.totalorder %s32, 0
      %p265 = por %p263, %p264
      %p266 = scmp.ne.s32.totalorder %s254, %s255
      %p267 = scmp.eq.s32.totalorder %s33, 3
      %p268 = por %p266, %p267
      %p270 = scmp.ne.s32.totalorder %s255, %s269
      %p271 = scmp.eq.s32.totalorder %s33, 0
      %p272 = por %p270, %p271
      %s274 = sadd.s32 %s273, 1
      %p277 = scmp.eq.s32.totalorder %s27, 3
      %p278 = scmp.ne.s32.totalorder %s273, %s275
      %p279 = scmp.eq.s32.totalorder %s27, 0
      %p280 = por %p278, %p279
      %p281 = scmp.ne.s32.totalorder %s273, %s275
      %p282 = scmp.eq.s32.totalorder %s32, 3
      %p283 = por %p281, %p282
      %p284 = scmp.ne.s32.totalorder %s275, %s276
      %p285 = scmp.eq.s32.totalorder %s32, 0
      %p286 = por %p284, %p285
      %p287 = scmp.ne.s32.totalorder %s275, %s276
      %p288 = scmp.eq.s32.totalorder %s33, 3
      %p289 = por %p287, %p288
      %p291 = scmp.ne.s32.totalorder %s276, %s290
      %p292 = scmp.eq.s32.totalorder %s33, 0
      %p293 = por %p291, %p292
      %s295 = sadd.s32 %s294, 1
      %p298 = scmp.eq.s32.totalorder %s27, 3
      %p299 = scmp.ne.s32.totalorder %s294, %s296
      %p300 = scmp.eq.s32.totalorder %s27, 0
      %p301 = por %p299, %p300
      %p302 = scmp.ne.s32.totalorder %s294, %s296
      %p303 = scmp.eq.s32.totalorder %s32, 3
      %p304 = por %p302, %p303
      %p305 = scmp.ne.s32.totalorder %s296, %s297
      %p306 = scmp.eq.s32.totalorder %s32, 0
      %p307 = por %p305, %p306
      %p308 = scmp.ne.s32.totalorder %s296, %s297
      %p309 = scmp.eq.s32.totalorder %s33, 3
      %p310 = por %p308, %p309
      %p312 = scmp.ne.s32.totalorder %s297, %s311
      %p313 = scmp.eq.s32.totalorder %s33, 0
      %p314 = por %p312, %p313
      %s316 = sadd.s32 %s315, 1
      %p319 = scmp.eq.s32.totalorder %s27, 3
      %p320 = scmp.ne.s32.totalorder %s315, %s317
      %p321 = scmp.eq.s32.totalorder %s27, 0
      %p322 = por %p320, %p321
      %p323 = scmp.ne.s32.totalorder %s315, %s317
      %p324 = scmp.eq.s32.totalorder %s32, 3
      %p325 = por %p323, %p324
      %p326 = scmp.ne.s32.totalorder %s317, %s318
      %p327 = scmp.eq.s32.totalorder %s32, 0
      %p328 = por %p326, %p327
      %p329 = scmp.ne.s32.totalorder %s317, %s318
      %p330 = scmp.eq.s32.totalorder %s33, 3
      %p331 = por %p329, %p330
      %p333 = scmp.ne.s32.totalorder %s318, %s332
      %p334 = scmp.eq.s32.totalorder %s33, 0
      %p335 = por %p333, %p334
      %s336 = ssub.s32 %s34, %s46
      %s337 = ssub.s32 %s35, %s42
      %s338 = sor.u32 %s336, %s337
      %p339 = scmp.eq.s32.totalorder %s338, 0
      %s341 = sadd.s32 %s340, 1
      %s342 = scalar_select %p339, %s340, %s341
      %p345 = pneg %p339
      %p346 = scmp.eq.s32.totalorder %s27, 3
      %p347 = por %p345, %p346
      %p348 = scmp.ne.s32.totalorder %s340, %s343
      %p349 = scmp.eq.s32.totalorder %s27, 0
      %p350 = por %p348, %p349
      %p351 = scmp.ne.s32.totalorder %s340, %s343
      %p352 = scmp.eq.s32.totalorder %s32, 3
      %p353 = por %p351, %p352
      %p354 = scmp.ne.s32.totalorder %s343, %s344
      %p355 = scmp.eq.s32.totalorder %s32, 0
      %p356 = por %p354, %p355
      %p357 = scmp.ne.s32.totalorder %s343, %s344
      %p358 = scmp.eq.s32.totalorder %s33, 3
      %p359 = por %p357, %p358
      %p361 = scmp.ne.s32.totalorder %s344, %s360
      %p362 = scmp.eq.s32.totalorder %s33, 0
      %p363 = por %p361, %p362
      %p364 = scmp.le.s32.totalorder 1, %s27
      %p365 = scmp.lt.s32.totalorder %s27, 5
      %p366 = pnand %p364, %p365
      %p367 = pneg %p366
      // Predicated region
      $region9: #{tpu_custom_call.1} parent=5 // pred_check
        _
      $region10: #{tpu_custom_call.1} parent=5 // pred_check_branch
        %369 = sbr.rel (%p366) target = $region12
      $region11: #{tpu_custom_call.1} parent=5 // pred_region
        %s370 = ssub.s32 %s27, 1
        // Predicated region
        $region13: #{tpu_custom_call.1} parent=11 // pred_check
          %p371 = pneg %p160
        $region14: #{tpu_custom_call.1} parent=11 // pred_check_branch
          %373 = sbr.rel (%p371) target = $region16
        $region15: #{tpu_custom_call.1} parent=11 // pred_region
          _
        $region16: #{tpu_custom_call.1} parent=11 // pred_fallthru
          _
        // Predicated region
        $region17: #{tpu_custom_call.1} parent=11 // pred_check
          %p374 = pneg %p181
        $region18: #{tpu_custom_call.1} parent=11 // pred_check_branch
          %376 = sbr.rel (%p374) target = $region20
        $region19: #{tpu_custom_call.1} parent=11 // pred_region
          _
        $region20: #{tpu_custom_call.1} parent=11 // pred_fallthru
          _
        // Predicated region
        $region21: #{tpu_custom_call.1} parent=11 // pred_check
          %p377 = pneg %p202
        $region22: #{tpu_custom_call.1} parent=11 // pred_check_branch
          %379 = sbr.rel (%p377) target = $region24
        $region23: #{tpu_custom_call.1} parent=11 // pred_region
          _
        $region24: #{tpu_custom_call.1} parent=11 // pred_fallthru
          _
        // Predicated region
        $region25: #{tpu_custom_call.1} parent=11 // pred_check
          %p380 = pneg %p223
        $region26: #{tpu_custom_call.1} parent=11 // pred_check_branch
          %382 = sbr.rel (%p380) target = $region28
        $region27: #{tpu_custom_call.1} parent=11 // pred_region
          _
        $region28: #{tpu_custom_call.1} parent=11 // pred_fallthru
          _
        // Predicated region
        $region29: #{tpu_custom_call.1} parent=11 // pred_check
          %p383 = pneg %p244
        $region30: #{tpu_custom_call.1} parent=11 // pred_check_branch
          %385 = sbr.rel (%p383) target = $region32
        $region31: #{tpu_custom_call.1} parent=11 // pred_region
          _
        $region32: #{tpu_custom_call.1} parent=11 // pred_fallthru
          _
        // Predicated region
        $region33: #{tpu_custom_call.1} parent=11 // pred_check
          %p386 = pneg %p265
        $region34: #{tpu_custom_call.1} parent=11 // pred_check_branch
          %388 = sbr.rel (%p386) target = $region36
        $region35: #{tpu_custom_call.1} parent=11 // pred_region
          _
        $region36: #{tpu_custom_call.1} parent=11 // pred_fallthru
          _
        // Predicated region
        $region37: #{tpu_custom_call.1} parent=11 // pred_check
          %p389 = pneg %p286
        $region38: #{tpu_custom_call.1} parent=11 // pred_check_branch
          %391 = sbr.rel (%p389) target = $region40
        $region39: #{tpu_custom_call.1} parent=11 // pred_region
          _
        $region40: #{tpu_custom_call.1} parent=11 // pred_fallthru
          _
        // Predicated region
        $region41: #{tpu_custom_call.1} parent=11 // pred_check
          %p392 = pneg %p307
        $region42: #{tpu_custom_call.1} parent=11 // pred_check_branch
          %394 = sbr.rel (%p392) target = $region44
        $region43: #{tpu_custom_call.1} parent=11 // pred_region
          _
        $region44: #{tpu_custom_call.1} parent=11 // pred_fallthru
          _
        // Predicated region
        $region45: #{tpu_custom_call.1} parent=11 // pred_check
          %p395 = pneg %p328
        $region46: #{tpu_custom_call.1} parent=11 // pred_check_branch
          %397 = sbr.rel (%p395) target = $region48
        $region47: #{tpu_custom_call.1} parent=11 // pred_region
          _
        $region48: #{tpu_custom_call.1} parent=11 // pred_fallthru
          _
      $region12: #{tpu_custom_call.1} parent=5 // pred_fallthru
        _
      %p398 = scmp.lt.s32.totalorder %s27, 4
      // Predicated region
      $region49: #{tpu_custom_call.1} parent=5 // pred_check
        %p399 = pneg %p398
      $region50: #{tpu_custom_call.1} parent=5 // pred_check_branch
        %401 = sbr.rel (%p399) target = $region52
      $region51: #{tpu_custom_call.1} parent=5 // pred_region
        // Predicated region
        $region53: #{tpu_custom_call.1} parent=51 // pred_check
          %p402 = pneg %p61
        $region54: #{tpu_custom_call.1} parent=51 // pred_check_branch
          %404 = sbr.rel (%p402) target = $region56
        $region55: #{tpu_custom_call.1} parent=51 // pred_region
          %s405 = sand.u32 %s51, 1
          %s406 = scalar_lea.sflag [#allocation3], %s405
          %s407 = sand.u32 %s51, 1
          %s408 = smul.addr %s407, 128
          %s409 = scalar_lea.vmem [#allocation2], %s408
          %s410 = smul.u32 8, %s35
          %s412 = ssub.s32 2048, 2048
          %413 = vsyncadd %s406, %s412
          %s414 = smul.addr %s410, 2
          %s415 = smul.addr %s34, 32
          %s416 = sadd.s32 %s414, %s415
          %s417 = smul.addr %s416, 128
          %s418 = scalar_lea.hbm %s0, %s417
          %s419 = sshll.u32 %s409, 4
          %s420 = int_to_ptr.vmem [resolvable:$true] %s419
          %425 = dma.hbm_to_vmem [thread:$0]  %s418, 2048, %s420, %s406, 128, 128, 8
        $region56: #{tpu_custom_call.1} parent=51 // pred_fallthru
          _
        // Predicated region
        $region57: #{tpu_custom_call.1} parent=51 // pred_check
          %p426 = pneg %p97
        $region58: #{tpu_custom_call.1} parent=51 // pred_check_branch
          %428 = sbr.rel (%p426) target = $region60
        $region59: #{tpu_custom_call.1} parent=51 // pred_region
          %s429 = sand.u32 %s27, 1
          %s430 = scalar_lea.sflag [#allocation6], %s429
          %s431 = sand.u32 %s87, 1
          %s432 = smul.addr %s431, 16
          %s433 = scalar_lea.vmem [#allocation5], %s432
          %s434 = smul.u32 %s35, 8
          %s435 = ssub.s32 %s434, 1
          %p436 = scmp.gt.s32.totalorder %s435, 0
          %s437 = scalar_select %p436, %s435, 0
          %s439 = ssub.s32 256, 256
          %440 = vsyncadd %s430, %s439
          %s441 = smul.addr %s437, 2
          %s442 = smul.addr %s34, 32
          %s443 = sadd.s32 %s441, %s442
          %s444 = smul.addr %s443, 128
          %s445 = scalar_lea.hbm %s1, %s444
          %s446 = sshll.u32 %s433, 4
          %s447 = int_to_ptr.vmem [resolvable:$true] %s446
          %452 = dma.hbm_to_vmem [thread:$0]  %s445, 256, %s447, %s430, 128, 128, 8
        $region60: #{tpu_custom_call.1} parent=51 // pred_fallthru
          _
        // Predicated region
        $region61: #{tpu_custom_call.1} parent=51 // pred_check
          %p453 = pneg %p133
        $region62: #{tpu_custom_call.1} parent=51 // pred_check_branch
          %455 = sbr.rel (%p453) target = $region64
        $region63: #{tpu_custom_call.1} parent=51 // pred_region
          %s456 = sand.u32 %s27, 1
          %s457 = scalar_lea.sflag [#allocation6], %s456
          %s458 = sand.u32 %s123, 1
          %s459 = smul.addr %s458, 16
          %s460 = scalar_lea.vmem [#allocation7], %s459
          %s461 = sadd.s32 %s35, 1
          %s462 = smul.u32 %s461, 8
          %p463 = scmp.lt.s32.totalorder %s462, 15
          %s464 = scalar_select %p463, %s462, 15
          %s466 = ssub.s32 256, 256
          %467 = vsyncadd %s457, %s466
          %s468 = smul.addr %s464, 2
          %s469 = smul.addr %s34, 32
          %s470 = sadd.s32 %s468, %s469
          %s471 = smul.addr %s470, 128
          %s472 = scalar_lea.hbm %s2, %s471
          %s473 = sshll.u32 %s460, 4
          %s474 = int_to_ptr.vmem [resolvable:$true] %s473
          %479 = dma.hbm_to_vmem [thread:$0]  %s472, 256, %s474, %s457, 128, 128, 8
        $region64: #{tpu_custom_call.1} parent=51 // pred_fallthru
          _
      $region52: #{tpu_custom_call.1} parent=5 // pred_fallthru
        _
      %p480 = scmp.le.s32.totalorder 1, %s27
      %p481 = scmp.lt.s32.totalorder %s27, 5
      %p482 = pnand %p480, %p481
      %p483 = pneg %p482
      // Predicated region
      $region65: #{tpu_custom_call.1} parent=5 // pred_check
        _
      $region66: #{tpu_custom_call.1} parent=5 // pred_check_branch
        %485 = sbr.rel (%p482) target = $region68
      $region67: #{tpu_custom_call.1} parent=5 // pred_region
        %s486 = ssub.s32 %s27, 1
        %s487 = sand.u32 %s54, 1
        %s488 = scalar_lea.sflag [#allocation3], %s487
        %s489 = sand.u32 %s54, 1
        %s490 = smul.addr %s489, 128
        %s491 = scalar_lea.vmem [#allocation2], %s490
        // Predicated region
        $region69: #{tpu_custom_call.1} parent=67 // pred_check
          %p492 = pneg %p67
        $region70: #{tpu_custom_call.1} parent=67 // pred_check_branch
          %494 = sbr.rel (%p492) target = $region72
        $region71: #{tpu_custom_call.1} parent=67 // pred_region
          %495 = dma.done %s488, 2048
        $region72: #{tpu_custom_call.1} parent=67 // pred_fallthru
          _
        %s496 = sand.u32 %s32, 1
        %s497 = scalar_lea.sflag [#allocation6], %s496
        %s498 = sand.u32 %s90, 1
        %s499 = smul.addr %s498, 16
        %s500 = scalar_lea.vmem [#allocation5], %s499
        // Predicated region
        $region73: #{tpu_custom_call.1} parent=67 // pred_check
          %p501 = pneg %p103
        $region74: #{tpu_custom_call.1} parent=67 // pred_check_branch
          %503 = sbr.rel (%p501) target = $region76
        $region75: #{tpu_custom_call.1} parent=67 // pred_region
          %504 = dma.done %s497, 256
        $region76: #{tpu_custom_call.1} parent=67 // pred_fallthru
          _
        %s505 = sand.u32 %s32, 1
        %s506 = scalar_lea.sflag [#allocation6], %s505
        %s507 = sand.u32 %s126, 1
        %s508 = smul.addr %s507, 16
        %s509 = scalar_lea.vmem [#allocation7], %s508
        // Predicated region
        $region77: #{tpu_custom_call.1} parent=67 // pred_check
          %p510 = pneg %p139
        $region78: #{tpu_custom_call.1} parent=67 // pred_check_branch
          %512 = sbr.rel (%p510) target = $region80
        $region79: #{tpu_custom_call.1} parent=67 // pred_region
          %513 = dma.done %s506, 256
        $region80: #{tpu_custom_call.1} parent=67 // pred_fallthru
          _
        %s514 = sand.u32 %s54, 1
        %s515 = scalar_lea.sflag [#allocation3], %s514
        %s516 = sand.u32 %s54, 1
        %s517 = smul.addr %s516, 128
        %s518 = scalar_lea.vmem [#allocation2], %s517
        %p519 = pneg %p67
        %p520 = pneg %p64
        %s521 = sand.u32 %s32, 1
        %s522 = scalar_lea.sflag [#allocation6], %s521
        %s523 = sand.u32 %s90, 1
        %s524 = smul.addr %s523, 16
        %s525 = scalar_lea.vmem [#allocation5], %s524
        %p526 = pneg %p103
        %p527 = pneg %p100
        %s528 = sand.u32 %s32, 1
        %s529 = scalar_lea.sflag [#allocation6], %s528
        %s530 = sand.u32 %s126, 1
        %s531 = smul.addr %s530, 16
        %s532 = scalar_lea.vmem [#allocation7], %s531
        %p533 = pneg %p139
        %p534 = pneg %p136
        %p535 = pneg %p160
        %p536 = pneg %p157
        %p537 = pneg %p181
        %p538 = pneg %p178
        %p539 = pneg %p202
        %p540 = pneg %p199
        %p541 = pneg %p223
        %p542 = pneg %p220
        %p543 = pneg %p244
        %p544 = pneg %p241
        %p545 = pneg %p265
        %p546 = pneg %p262
        %p547 = pneg %p286
        %p548 = pneg %p283
        %p549 = pneg %p307
        %p550 = pneg %p304
        %p551 = pneg %p328
        %p552 = pneg %p325
        %p553 = pneg %p356
        %p554 = pneg %p353
        %s555 = sand.u32 %s343, 1
        %s556 = scalar_lea.sflag [#allocation4], %s555
        %s557 = sand.u32 %s343, 1
        %s558 = smul.addr %s557, 128
        %s559 = scalar_lea.vmem [#allocation8], %s558
        %s560 = smul.u32 8, %s37
        %s561 = smul.u32 %s37, 8
        %s562 = ssub.s32 %s561, 1
        %p563 = scmp.gt.s32.totalorder %s562, 0
        %s564 = scalar_select %p563, %s562, 0
        %s565 = sadd.s32 %s37, 1
        %s566 = smul.u32 %s565, 8
        %p567 = scmp.lt.s32.totalorder %s566, 15
        %s568 = scalar_select %p567, %s566, 15
        %s569 = smul.u32 8, %s37
        %v571 = vld [vmem:[%s491] sm:$0xff]
        %v572 = vld [vmem:[%s491 + $0x8] sm:$0xff]
        %v573 = vld [vmem:[%s491 + $0x10] sm:$0xff]
        %v574 = vld [vmem:[%s491 + $0x18] sm:$0xff]
        %v575 = vld [vmem:[%s491 + $0x20] sm:$0xff]
        %v576 = vld [vmem:[%s491 + $0x28] sm:$0xff]
        %v577 = vld [vmem:[%s491 + $0x30] sm:$0xff]
        %v578 = vld [vmem:[%s491 + $0x38] sm:$0xff]
        %v579 = vld [vmem:[%s491 + $0x40] sm:$0xff]
        %v580 = vld [vmem:[%s491 + $0x48] sm:$0xff]
        %v581 = vld [vmem:[%s491 + $0x50] sm:$0xff]
        %v582 = vld [vmem:[%s491 + $0x58] sm:$0xff]
        %v583 = vld [vmem:[%s491 + $0x60] sm:$0xff]
        %v584 = vld [vmem:[%s491 + $0x68] sm:$0xff]
        %v585 = vld [vmem:[%s491 + $0x70] sm:$0xff]
        %v586 = vld [vmem:[%s491 + $0x78] sm:$0xff]
        %v587 = vld [vmem:[%s500] sm:$0xff]
        %v588 = vld [vmem:[%s500 + $0x8] sm:$0xff]
        %v589 = vld [vmem:[%s509] sm:$0xff]
        %v590 = vld [vmem:[%s509 + $0x8] sm:$0xff]
        %v591 = vpack.c.bf16 %v588, %v587
        %v592 = vpack.c.bf16 %v572, %v571
        %v593 = vpack.c.bf16 %v574, %v573
        %v594 = vpack.c.bf16 %v576, %v575
        %v595 = vpack.c.bf16 %v578, %v577
        %v596 = vpack.c.bf16 %v580, %v579
        %v597 = vpack.c.bf16 %v582, %v581
        %v598 = vpack.c.bf16 %v584, %v583
        %v599 = vpack.c.bf16 %v586, %v585
        %v600 = vpack.c.bf16 %v590, %v589
        %v601 = vld [vmem:[%s3] sm:$0xf]
        %v602 = vld [vmem:[%s3 + $0x4] sm:$0xf]
        %v603 = vld [vmem:[%s3 + $0x8] sm:$0xf]
        %v604 = vld [vmem:[%s3 + $0xc] sm:$0xf]
        %v605 = vld [vmem:[%s3 + $0x10] sm:$0xf]
        %v606 = vld [vmem:[%s3 + $0x14] sm:$0xf]
        %v607 = vld [vmem:[%s3 + $0x18] sm:$0xf]
        %v608 = vld [vmem:[%s3 + $0x1c] sm:$0xf]
        %v609 = vld [vmem:[%s3 + $0x20] sm:$0xf]
        %v610 = vld [vmem:[%s3 + $0x24] sm:$0xf]
        %v611 = vld [vmem:[%s3 + $0x28] sm:$0xf]
        %v612 = vld [vmem:[%s3 + $0x2c] sm:$0xf]
        %v613 = vld [vmem:[%s3 + $0x30] sm:$0xf]
        %v614 = vld [vmem:[%s3 + $0x34] sm:$0xf]
        %v615 = vld [vmem:[%s3 + $0x38] sm:$0xf]
        %v616 = vld [vmem:[%s3 + $0x3c] sm:$0xf]
        %v633 = vunpack.c.l.b16 %v601
        %v634 = vunpack.c.l.b16 %v602
        %v635 = vunpack.c.l.b16 %v603
        %v636 = vunpack.c.l.b16 %v604
        %v637 = vunpack.c.l.b16 %v605
        %v638 = vunpack.c.l.b16 %v606
        %v639 = vunpack.c.l.b16 %v607
        %v640 = vunpack.c.l.b16 %v608
        %v641 = vunpack.c.l.b16 %v609
        %v642 = vunpack.c.l.b16 %v610
        %v643 = vunpack.c.l.b16 %v611
        %v644 = vunpack.c.l.b16 %v612
        %v645 = vunpack.c.l.b16 %v613
        %v646 = vunpack.c.l.b16 %v614
        %v647 = vunpack.c.l.b16 %v615
        %v648 = vunpack.c.l.b16 %v616
        %v649 = vpack.c.b16 %v634, %v633
        %v650 = vpack.c.b16 %v636, %v635
        %v651 = vpack.c.b16 %v638, %v637
        %v652 = vpack.c.b16 %v640, %v639
        %v653 = vpack.c.b16 %v642, %v641
        %v654 = vpack.c.b16 %v644, %v643
        %v655 = vpack.c.b16 %v646, %v645
        %v656 = vpack.c.b16 %v648, %v647
        %665 = vmatprep.subr.bf16.mxu0 0
        %666 = vmatpush1.bf16.msra.mxu0 %v649
        %667 = vmatprep.subr.bf16.mxu0 0
        %668 = vmatpush1.bf16.msra.mxu0 %v650
        %669 = vmatprep.subr.bf16.mxu0 0
        %670 = vmatpush1.bf16.msra.mxu0 %v651
        %671 = vmatprep.subr.bf16.mxu0 0
        %672 = vmatpush1.bf16.msra.mxu0 %v652
        %673 = vmatprep.subr.bf16.mxu0 0
        %674 = vmatpush1.bf16.msra.mxu0 %v653
        %675 = vmatprep.subr.bf16.mxu0 0
        %676 = vmatpush1.bf16.msra.mxu0 %v654
        %677 = vmatprep.subr.bf16.mxu0 0
        %678 = vmatpush1.bf16.msra.mxu0 %v655
        %679 = vmatprep.subr.bf16.mxu0 0
        %680 = vmatpush1.bf16.msra.mxu0 %v656
        %681 = vmatprep.subr.bf16.mxu0 0
        %682 = vmatpush1.bf16.msra.mxu0 0
        %683 = vmatprep.subr.bf16.mxu0 0
        %684 = vmatpush1.bf16.msra.mxu0 0
        %685 = vmatprep.subr.bf16.mxu0 0
        %686 = vmatpush1.bf16.msra.mxu0 0
        %687 = vmatprep.subr.bf16.mxu0 0
        %688 = vmatpush1.bf16.msra.mxu0 0
        %689 = vmatprep.subr.bf16.mxu0 0
        %690 = vmatpush1.bf16.msra.mxu0 0
        %691 = vmatprep.subr.bf16.mxu0 0
        %692 = vmatpush1.bf16.msra.mxu0 0
        %693 = vmatprep.subr.bf16.mxu0 0
        %694 = vmatpush1.bf16.msra.mxu0 0
        %695 = vmatprep.subr.bf16.mxu0 0
        %696 = vmatpush1.bf16.msra.mxu0 0
        %697 = vmatprep.mubr.bf16.mxu0 0
        %698 = vmatmul.mubr.bf16.gmra.mrb[0].mxu0 %v591
        %v699 = vpop.f32.mrb[0].mxu0
        %v700 = vadd.f32 0.0, %v699
        %v701 = vpop.f32.mrb[0].mxu0
        %v702 = vpop.f32.mrb[0].mxu0
        %v703 = vadd.f32 0.0, %v702
        %v704 = vpop.f32.mrb[0].mxu0
        %705 = vmatprep.mubr.bf16.mxu0 0
        %706 = vmatmul.mubr.bf16.gmra.mrb[0].mxu0 %v592
        %v707 = vpop.f32.mrb[0].mxu0
        %v708 = vadd.f32 0.0, %v707
        %v709 = vpop.f32.mrb[0].mxu0
        %v710 = vpop.f32.mrb[0].mxu0
        %v711 = vadd.f32 0.0, %v710
        %v712 = vpop.f32.mrb[0].mxu0
        %713 = vmatprep.mubr.bf16.mxu0 0
        %714 = vmatmul.mubr.bf16.gmra.mrb[0].mxu0 %v593
        %v715 = vpop.f32.mrb[0].mxu0
        %v716 = vadd.f32 0.0, %v715
        %v717 = vpop.f32.mrb[0].mxu0
        %v718 = vpop.f32.mrb[0].mxu0
        %v719 = vadd.f32 0.0, %v718
        %v720 = vpop.f32.mrb[0].mxu0
        %721 = vmatprep.mubr.bf16.mxu0 0
        %722 = vmatmul.mubr.bf16.gmra.mrb[0].mxu0 %v594
        %v723 = vpop.f32.mrb[0].mxu0
        %v724 = vadd.f32 0.0, %v723
        %v725 = vpop.f32.mrb[0].mxu0
        %v726 = vpop.f32.mrb[0].mxu0
        %v727 = vadd.f32 0.0, %v726
        %v728 = vpop.f32.mrb[0].mxu0
        %729 = vmatprep.mubr.bf16.mxu0 0
        %730 = vmatmul.mubr.bf16.gmra.mrb[0].mxu0 %v595
        %v731 = vpop.f32.mrb[0].mxu0
        %v732 = vadd.f32 0.0, %v731
        %v733 = vpop.f32.mrb[0].mxu0
        %v734 = vpop.f32.mrb[0].mxu0
        %v735 = vadd.f32 0.0, %v734
        %v736 = vpop.f32.mrb[0].mxu0
        %737 = vmatprep.mubr.bf16.mxu0 0
        %738 = vmatmul.mubr.bf16.gmra.mrb[0].mxu0 %v596
        %v739 = vpop.f32.mrb[0].mxu0
        %v740 = vadd.f32 0.0, %v739
        %v741 = vpop.f32.mrb[0].mxu0
        %v742 = vpop.f32.mrb[0].mxu0
        %v743 = vadd.f32 0.0, %v742
        %v744 = vpop.f32.mrb[0].mxu0
        %745 = vmatprep.mubr.bf16.mxu0 0
        %746 = vmatmul.mubr.bf16.gmra.mrb[0].mxu0 %v597
        %v747 = vpop.f32.mrb[0].mxu0
        %v748 = vadd.f32 0.0, %v747
        %v749 = vpop.f32.mrb[0].mxu0
        %v750 = vpop.f32.mrb[0].mxu0
        %v751 = vadd.f32 0.0, %v750
        %v752 = vpop.f32.mrb[0].mxu0
        %753 = vmatprep.mubr.bf16.mxu0 0
        %754 = vmatmul.mubr.bf16.gmra.mrb[0].mxu0 %v598
        %v755 = vpop.f32.mrb[0].mxu0
        %v756 = vadd.f32 0.0, %v755
        %v757 = vpop.f32.mrb[0].mxu0
        %v758 = vpop.f32.mrb[0].mxu0
        %v759 = vadd.f32 0.0, %v758
        %v760 = vpop.f32.mrb[0].mxu0
        %761 = vmatprep.mubr.bf16.mxu0 0
        %762 = vmatmul.mubr.bf16.gmra.mrb[0].mxu0 %v599
        %v763 = vpop.f32.mrb[0].mxu0
        %v764 = vadd.f32 0.0, %v763
        %v765 = vpop.f32.mrb[0].mxu0
        %v766 = vpop.f32.mrb[0].mxu0
        %v767 = vadd.f32 0.0, %v766
        %v768 = vpop.f32.mrb[0].mxu0
        %769 = vmatprep.mubr.bf16.mxu0 0
        %770 = vmatmul.mubr.bf16.gmra.mrb[0].mxu0 %v600
        %v771 = vpop.f32.mrb[0].mxu0
        %v772 = vadd.f32 0.0, %v771
        %v773 = vpop.f32.mrb[0].mxu0
        %v774 = vpop.f32.mrb[0].mxu0
        %v775 = vadd.f32 0.0, %v774
        %v776 = vpop.f32.mrb[0].mxu0
        %777 = vdwg.mxu0
        %v778 = vld [vmem:[%s6] sm:$0x1]
        %v780 = vlaneseq
        %v781 = vshrl.u32 %v780, 7
        %v782 = vsub.s32 0, %v781
        %v783 = vrot.slane %v778, %v782
        %v785 = vmul.f32 %v700, %v783
        %v786 = vmul.f32 %v703, %v783
        %v787 = vmul.f32 %v708, %v783
        %v788 = vmul.f32 %v711, %v783
        %v789 = vmul.f32 %v716, %v783
        %v790 = vmul.f32 %v719, %v783
        %v791 = vmul.f32 %v724, %v783
        %v792 = vmul.f32 %v727, %v783
        %v793 = vmul.f32 %v732, %v783
        %v794 = vmul.f32 %v735, %v783
        %v795 = vmul.f32 %v740, %v783
        %v796 = vmul.f32 %v743, %v783
        %v797 = vmul.f32 %v748, %v783
        %v798 = vmul.f32 %v751, %v783
        %v799 = vmul.f32 %v756, %v783
        %v800 = vmul.f32 %v759, %v783
        %v801 = vmul.f32 %v764, %v783
        %v802 = vmul.f32 %v767, %v783
        %v803 = vmul.f32 %v772, %v783
        %v804 = vmul.f32 %v775, %v783
        %v805 = vld [vmem:[%s7] sm:$0x1]
        %v807 = vlaneseq
        %v808 = vshrl.u32 %v807, 7
        %v809 = vsub.s32 0, %v808
        %v810 = vrot.slane %v805, %v809
        %v812 = vadd.f32 %v785, %v810
        %v813 = vadd.f32 %v786, %v810
        %v814 = vadd.f32 %v787, %v810
        %v815 = vadd.f32 %v788, %v810
        %v816 = vadd.f32 %v789, %v810
        %v817 = vadd.f32 %v790, %v810
        %v818 = vadd.f32 %v791, %v810
        %v819 = vadd.f32 %v792, %v810
        %v820 = vadd.f32 %v793, %v810
        %v821 = vadd.f32 %v794, %v810
        %v822 = vadd.f32 %v795, %v810
        %v823 = vadd.f32 %v796, %v810
        %v824 = vadd.f32 %v797, %v810
        %v825 = vadd.f32 %v798, %v810
        %v826 = vadd.f32 %v799, %v810
        %v827 = vadd.f32 %v800, %v810
        %v828 = vadd.f32 %v801, %v810
        %v829 = vadd.f32 %v802, %v810
        %v830 = vadd.f32 %v803, %v810
        %v831 = vadd.f32 %v804, %v810
        %v832 = vmax.f32 %v812, 0.0
        %v833 = vmax.f32 %v813, 0.0
        %v834 = vmax.f32 %v814, 0.0
        %v835 = vmax.f32 %v815, 0.0
        %v836 = vmax.f32 %v816, 0.0
        %v837 = vmax.f32 %v817, 0.0
        %v838 = vmax.f32 %v818, 0.0
        %v839 = vmax.f32 %v819, 0.0
        %v840 = vmax.f32 %v820, 0.0
        %v841 = vmax.f32 %v821, 0.0
        %v842 = vmax.f32 %v822, 0.0
        %v843 = vmax.f32 %v823, 0.0
        %v844 = vmax.f32 %v824, 0.0
        %v845 = vmax.f32 %v825, 0.0
        %v846 = vmax.f32 %v826, 0.0
        %v847 = vmax.f32 %v827, 0.0
        %v848 = vmax.f32 %v828, 0.0
        %v849 = vmax.f32 %v829, 0.0
        %v850 = vmax.f32 %v830, 0.0
        %v851 = vmax.f32 %v831, 0.0
        %v852 = vlaneseq
        %v853 = vshrl.u32 %v852, 7
        %v854 = vadd.s32 %v853, 8
        %v855 = vadd.s32 %v853, 16
        %v856 = vadd.s32 %v853, 24
        %v857 = vadd.s32 %v853, 32
        %v858 = vadd.s32 %v853, 40
        %v859 = vadd.s32 %v853, 48
        %v860 = vadd.s32 %v853, 56
        %v861 = vadd.s32 %v853, 64
        %v862 = vadd.s32 %v853, 72
        %v863 = vadd.s32 %v853, 80
        %v864 = vadd.s32 %v853, 88
        %v865 = vadd.s32 %v853, 96
        %v866 = vadd.s32 %v853, 104
        %v867 = vadd.s32 %v853, 112
        %v868 = vadd.s32 %v853, 120
        %v869 = vadd.s32 %v853, 128
        %v870 = vadd.s32 %v853, 136
        %v871 = vadd.s32 %v853, 144
        %v872 = vadd.s32 %v853, 152
        %p873 = scmp.eq.s32.totalorder %s37, 0
        %s874 = scalar_select %p873, 0.0, 1.0
        %p875 = scmp.eq.s32.totalorder %s37, 1
        %s876 = scalar_select %p875, 0.0, 1.0
        %vm877 = vcmp.lt.s32.totalorder %v853, 16
        %vm878 = vcmp.lt.s32.totalorder %v854, 16
        %vm879 = vcmp.lt.s32.totalorder %v855, 16
        %vm880 = vcmp.lt.s32.totalorder %v856, 16
        %vm881 = vcmp.lt.s32.totalorder %v857, 16
        %vm882 = vcmp.lt.s32.totalorder %v858, 16
        %vm883 = vcmp.lt.s32.totalorder %v859, 16
        %vm884 = vcmp.lt.s32.totalorder %v860, 16
        %vm885 = vcmp.lt.s32.totalorder %v861, 16
        %vm886 = vcmp.lt.s32.totalorder %v862, 16
        %vm887 = vcmp.lt.s32.totalorder %v863, 16
        %vm888 = vcmp.lt.s32.totalorder %v864, 16
        %vm889 = vcmp.lt.s32.totalorder %v865, 16
        %vm890 = vcmp.lt.s32.totalorder %v866, 16
        %vm891 = vcmp.lt.s32.totalorder %v867, 16
        %vm892 = vcmp.lt.s32.totalorder %v868, 16
        %vm893 = vcmp.lt.s32.totalorder %v869, 16
        %vm894 = vcmp.lt.s32.totalorder %v870, 16
        %vm895 = vcmp.lt.s32.totalorder %v871, 16
        %vm896 = vcmp.lt.s32.totalorder %v872, 16
        %v897 = vstv %s874
        %v898 = vsel %vm877, %v897, 1.0
        %v899 = vsel %vm878, %v897, 1.0
        %v900 = vsel %vm879, %v897, 1.0
        %v901 = vsel %vm880, %v897, 1.0
        %v902 = vsel %vm881, %v897, 1.0
        %v903 = vsel %vm882, %v897, 1.0
        %v904 = vsel %vm883, %v897, 1.0
        %v905 = vsel %vm884, %v897, 1.0
        %v906 = vsel %vm885, %v897, 1.0
        %v907 = vsel %vm886, %v897, 1.0
        %v908 = vsel %vm887, %v897, 1.0
        %v909 = vsel %vm888, %v897, 1.0
        %v910 = vsel %vm889, %v897, 1.0
        %v911 = vsel %vm890, %v897, 1.0
        %v912 = vsel %vm891, %v897, 1.0
        %v913 = vsel %vm892, %v897, 1.0
        %v914 = vsel %vm893, %v897, 1.0
        %v915 = vsel %vm894, %v897, 1.0
        %v916 = vsel %vm895, %v897, 1.0
        %v917 = vsel %vm896, %v897, 1.0
        %vm918 = vcmp.ge.s32.totalorder %v853, 144
        %vm919 = vcmp.ge.s32.totalorder %v854, 144
        %vm920 = vcmp.ge.s32.totalorder %v855, 144
        %vm921 = vcmp.ge.s32.totalorder %v856, 144
        %vm922 = vcmp.ge.s32.totalorder %v857, 144
        %vm923 = vcmp.ge.s32.totalorder %v858, 144
        %vm924 = vcmp.ge.s32.totalorder %v859, 144
        %vm925 = vcmp.ge.s32.totalorder %v860, 144
        %vm926 = vcmp.ge.s32.totalorder %v861, 144
        %vm927 = vcmp.ge.s32.totalorder %v862, 144
        %vm928 = vcmp.ge.s32.totalorder %v863, 144
        %vm929 = vcmp.ge.s32.totalorder %v864, 144
        %vm930 = vcmp.ge.s32.totalorder %v865, 144
        %vm931 = vcmp.ge.s32.totalorder %v866, 144
        %vm932 = vcmp.ge.s32.totalorder %v867, 144
        %vm933 = vcmp.ge.s32.totalorder %v868, 144
        %vm934 = vcmp.ge.s32.totalorder %v869, 144
        %vm935 = vcmp.ge.s32.totalorder %v870, 144
        %vm936 = vcmp.ge.s32.totalorder %v871, 144
        %vm937 = vcmp.ge.s32.totalorder %v872, 144
        %v938 = vstv %s876
        %v939 = vsel %vm918, %v938, 1.0
        %v940 = vsel %vm919, %v938, 1.0
        %v941 = vsel %vm920, %v938, 1.0
        %v942 = vsel %vm921, %v938, 1.0
        %v943 = vsel %vm922, %v938, 1.0
        %v944 = vsel %vm923, %v938, 1.0
        %v945 = vsel %vm924, %v938, 1.0
        %v946 = vsel %vm925, %v938, 1.0
        %v947 = vsel %vm926, %v938, 1.0
        %v948 = vsel %vm927, %v938, 1.0
        %v949 = vsel %vm928, %v938, 1.0
        %v950 = vsel %vm929, %v938, 1.0
        %v951 = vsel %vm930, %v938, 1.0
        %v952 = vsel %vm931, %v938, 1.0
        %v953 = vsel %vm932, %v938, 1.0
        %v954 = vsel %vm933, %v938, 1.0
        %v955 = vsel %vm934, %v938, 1.0
        %v956 = vsel %vm935, %v938, 1.0
        %v957 = vsel %vm936, %v938, 1.0
        %v958 = vsel %vm937, %v938, 1.0
        %v959 = vmul.f32 %v898, %v939
        %v960 = vmul.f32 %v899, %v940
        %v961 = vmul.f32 %v900, %v941
        %v962 = vmul.f32 %v901, %v942
        %v963 = vmul.f32 %v902, %v943
        %v964 = vmul.f32 %v903, %v944
        %v965 = vmul.f32 %v904, %v945
        %v966 = vmul.f32 %v905, %v946
        %v967 = vmul.f32 %v906, %v947
        %v968 = vmul.f32 %v907, %v948
        %v969 = vmul.f32 %v908, %v949
        %v970 = vmul.f32 %v909, %v950
        %v971 = vmul.f32 %v910, %v951
        %v972 = vmul.f32 %v911, %v952
        %v973 = vmul.f32 %v912, %v953
        %v974 = vmul.f32 %v913, %v954
        %v975 = vmul.f32 %v914, %v955
        %v976 = vmul.f32 %v915, %v956
        %v977 = vmul.f32 %v916, %v957
        %v978 = vmul.f32 %v917, %v958
        %v979 = vmul.f32 %v832, %v959
        %v980 = vmul.f32 %v833, %v960
        %v981 = vmul.f32 %v834, %v961
        %v982 = vmul.f32 %v835, %v962
        %v983 = vmul.f32 %v836, %v963
        %v984 = vmul.f32 %v837, %v964
        %v985 = vmul.f32 %v838, %v965
        %v986 = vmul.f32 %v839, %v966
        %v987 = vmul.f32 %v840, %v967
        %v988 = vmul.f32 %v841, %v968
        %v989 = vmul.f32 %v842, %v969
        %v990 = vmul.f32 %v843, %v970
        %v991 = vmul.f32 %v844, %v971
        %v992 = vmul.f32 %v845, %v972
        %v993 = vmul.f32 %v846, %v973
        %v994 = vmul.f32 %v847, %v974
        %v995 = vmul.f32 %v848, %v975
        %v996 = vmul.f32 %v849, %v976
        %v997 = vmul.f32 %v850, %v977
        %v998 = vmul.f32 %v851, %v978
        %vm999 = vcmp.lt.s32.totalorder %v853, 0
        %v1000 = vsub.s32 0, %v853
        %v1001 = vsel %vm999, %v1000, %v853
        %v1002 = vshrl.u32 %v1001, 4
        %v1003 = vand.u32 %v1001, 15
        %v1004 = vsub.s32 0, %v1003
        %v1005 = vsel %vm999, %v1004, %v1003
        %vm1006 = vcmp.lt.s32.totalorder %v854, 0
        %v1007 = vsub.s32 0, %v854
        %v1008 = vsel %vm1006, %v1007, %v854
        %v1009 = vshrl.u32 %v1008, 4
        %v1010 = vand.u32 %v1008, 15
        %v1011 = vsub.s32 0, %v1010
        %v1012 = vsel %vm1006, %v1011, %v1010
        %vm1013 = vcmp.lt.s32.totalorder %v855, 0
        %v1014 = vsub.s32 0, %v855
        %v1015 = vsel %vm1013, %v1014, %v855
        %v1016 = vshrl.u32 %v1015, 4
        %v1017 = vand.u32 %v1015, 15
        %v1018 = vsub.s32 0, %v1017
        %v1019 = vsel %vm1013, %v1018, %v1017
        %vm1020 = vcmp.lt.s32.totalorder %v856, 0
        %v1021 = vsub.s32 0, %v856
        %v1022 = vsel %vm1020, %v1021, %v856
        %v1023 = vshrl.u32 %v1022, 4
        %v1024 = vand.u32 %v1022, 15
        %v1025 = vsub.s32 0, %v1024
        %v1026 = vsel %vm1020, %v1025, %v1024
        %vm1027 = vcmp.lt.s32.totalorder %v857, 0
        %v1028 = vsub.s32 0, %v857
        %v1029 = vsel %vm1027, %v1028, %v857
        %v1030 = vshrl.u32 %v1029, 4
        %v1031 = vand.u32 %v1029, 15
        %v1032 = vsub.s32 0, %v1031
        %v1033 = vsel %vm1027, %v1032, %v1031
        %vm1034 = vcmp.lt.s32.totalorder %v858, 0
        %v1035 = vsub.s32 0, %v858
        %v1036 = vsel %vm1034, %v1035, %v858
        %v1037 = vshrl.u32 %v1036, 4
        %v1038 = vand.u32 %v1036, 15
        %v1039 = vsub.s32 0, %v1038
        %v1040 = vsel %vm1034, %v1039, %v1038
        %vm1041 = vcmp.lt.s32.totalorder %v859, 0
        %v1042 = vsub.s32 0, %v859
        %v1043 = vsel %vm1041, %v1042, %v859
        %v1044 = vshrl.u32 %v1043, 4
        %v1045 = vand.u32 %v1043, 15
        %v1046 = vsub.s32 0, %v1045
        %v1047 = vsel %vm1041, %v1046, %v1045
        %vm1048 = vcmp.lt.s32.totalorder %v860, 0
        %v1049 = vsub.s32 0, %v860
        %v1050 = vsel %vm1048, %v1049, %v860
        %v1051 = vshrl.u32 %v1050, 4
        %v1052 = vand.u32 %v1050, 15
        %v1053 = vsub.s32 0, %v1052
        %v1054 = vsel %vm1048, %v1053, %v1052
        %vm1055 = vcmp.lt.s32.totalorder %v861, 0
        %v1056 = vsub.s32 0, %v861
        %v1057 = vsel %vm1055, %v1056, %v861
        %v1058 = vshrl.u32 %v1057, 4
        %v1059 = vand.u32 %v1057, 15
        %v1060 = vsub.s32 0, %v1059
        %v1061 = vsel %vm1055, %v1060, %v1059
        %vm1062 = vcmp.lt.s32.totalorder %v862, 0
        %v1063 = vsub.s32 0, %v862
        %v1064 = vsel %vm1062, %v1063, %v862
        %v1065 = vshrl.u32 %v1064, 4
        %v1066 = vand.u32 %v1064, 15
        %v1067 = vsub.s32 0, %v1066
        %v1068 = vsel %vm1062, %v1067, %v1066
        %vm1069 = vcmp.lt.s32.totalorder %v863, 0
        %v1070 = vsub.s32 0, %v863
        %v1071 = vsel %vm1069, %v1070, %v863
        %v1072 = vshrl.u32 %v1071, 4
        %v1073 = vand.u32 %v1071, 15
        %v1074 = vsub.s32 0, %v1073
        %v1075 = vsel %vm1069, %v1074, %v1073
        %vm1076 = vcmp.lt.s32.totalorder %v864, 0
        %v1077 = vsub.s32 0, %v864
        %v1078 = vsel %vm1076, %v1077, %v864
        %v1079 = vshrl.u32 %v1078, 4
        %v1080 = vand.u32 %v1078, 15
        %v1081 = vsub.s32 0, %v1080
        %v1082 = vsel %vm1076, %v1081, %v1080
        %vm1083 = vcmp.lt.s32.totalorder %v865, 0
        %v1084 = vsub.s32 0, %v865
        %v1085 = vsel %vm1083, %v1084, %v865
        %v1086 = vshrl.u32 %v1085, 4
        %v1087 = vand.u32 %v1085, 15
        %v1088 = vsub.s32 0, %v1087
        %v1089 = vsel %vm1083, %v1088, %v1087
        %vm1090 = vcmp.lt.s32.totalorder %v866, 0
        %v1091 = vsub.s32 0, %v866
        %v1092 = vsel %vm1090, %v1091, %v866
        %v1093 = vshrl.u32 %v1092, 4
        %v1094 = vand.u32 %v1092, 15
        %v1095 = vsub.s32 0, %v1094
        %v1096 = vsel %vm1090, %v1095, %v1094
        %vm1097 = vcmp.lt.s32.totalorder %v867, 0
        %v1098 = vsub.s32 0, %v867
        %v1099 = vsel %vm1097, %v1098, %v867
        %v1100 = vshrl.u32 %v1099, 4
        %v1101 = vand.u32 %v1099, 15
        %v1102 = vsub.s32 0, %v1101
        %v1103 = vsel %vm1097, %v1102, %v1101
        %vm1104 = vcmp.lt.s32.totalorder %v868, 0
        %v1105 = vsub.s32 0, %v868
        %v1106 = vsel %vm1104, %v1105, %v868
        %v1107 = vshrl.u32 %v1106, 4
        %v1108 = vand.u32 %v1106, 15
        %v1109 = vsub.s32 0, %v1108
        %v1110 = vsel %vm1104, %v1109, %v1108
        %vm1111 = vcmp.lt.s32.totalorder %v869, 0
        %v1112 = vsub.s32 0, %v869
        %v1113 = vsel %vm1111, %v1112, %v869
        %v1114 = vshrl.u32 %v1113, 4
        %v1115 = vand.u32 %v1113, 15
        %v1116 = vsub.s32 0, %v1115
        %v1117 = vsel %vm1111, %v1116, %v1115
        %vm1118 = vcmp.lt.s32.totalorder %v870, 0
        %v1119 = vsub.s32 0, %v870
        %v1120 = vsel %vm1118, %v1119, %v870
        %v1121 = vshrl.u32 %v1120, 4
        %v1122 = vand.u32 %v1120, 15
        %v1123 = vsub.s32 0, %v1122
        %v1124 = vsel %vm1118, %v1123, %v1122
        %vm1125 = vcmp.lt.s32.totalorder %v871, 0
        %v1126 = vsub.s32 0, %v871
        %v1127 = vsel %vm1125, %v1126, %v871
        %v1128 = vshrl.u32 %v1127, 4
        %v1129 = vand.u32 %v1127, 15
        %v1130 = vsub.s32 0, %v1129
        %v1131 = vsel %vm1125, %v1130, %v1129
        %vm1132 = vcmp.lt.s32.totalorder %v872, 0
        %v1133 = vsub.s32 0, %v872
        %v1134 = vsel %vm1132, %v1133, %v872
        %v1135 = vshrl.u32 %v1134, 4
        %v1136 = vand.u32 %v1134, 15
        %v1137 = vsub.s32 0, %v1136
        %v1138 = vsel %vm1132, %v1137, %v1136
        %vm1139 = vcmp.ne.s32.totalorder %v1005, 0
        %vm1140 = vcmp.ne.s32.totalorder %v1012, 0
        %vm1141 = vcmp.ne.s32.totalorder %v1019, 0
        %vm1142 = vcmp.ne.s32.totalorder %v1026, 0
        %vm1143 = vcmp.ne.s32.totalorder %v1033, 0
        %vm1144 = vcmp.ne.s32.totalorder %v1040, 0
        %vm1145 = vcmp.ne.s32.totalorder %v1047, 0
        %vm1146 = vcmp.ne.s32.totalorder %v1054, 0
        %vm1147 = vcmp.ne.s32.totalorder %v1061, 0
        %vm1148 = vcmp.ne.s32.totalorder %v1068, 0
        %vm1149 = vcmp.ne.s32.totalorder %v1075, 0
        %vm1150 = vcmp.ne.s32.totalorder %v1082, 0
        %vm1151 = vcmp.ne.s32.totalorder %v1089, 0
        %vm1152 = vcmp.ne.s32.totalorder %v1096, 0
        %vm1153 = vcmp.ne.s32.totalorder %v1103, 0
        %vm1154 = vcmp.ne.s32.totalorder %v1110, 0
        %vm1155 = vcmp.ne.s32.totalorder %v1117, 0
        %vm1156 = vcmp.ne.s32.totalorder %v1124, 0
        %vm1157 = vcmp.ne.s32.totalorder %v1131, 0
        %vm1158 = vcmp.ne.s32.totalorder %v1138, 0
        %vm1159 = vcmp.lt.s32.totalorder %v1005, 0
        %vm1160 = vcmp.lt.s32.totalorder %v1012, 0
        %vm1161 = vcmp.lt.s32.totalorder %v1019, 0
        %vm1162 = vcmp.lt.s32.totalorder %v1026, 0
        %vm1163 = vcmp.lt.s32.totalorder %v1033, 0
        %vm1164 = vcmp.lt.s32.totalorder %v1040, 0
        %vm1165 = vcmp.lt.s32.totalorder %v1047, 0
        %vm1166 = vcmp.lt.s32.totalorder %v1054, 0
        %vm1167 = vcmp.lt.s32.totalorder %v1061, 0
        %vm1168 = vcmp.lt.s32.totalorder %v1068, 0
        %vm1169 = vcmp.lt.s32.totalorder %v1075, 0
        %vm1170 = vcmp.lt.s32.totalorder %v1082, 0
        %vm1171 = vcmp.lt.s32.totalorder %v1089, 0
        %vm1172 = vcmp.lt.s32.totalorder %v1096, 0
        %vm1173 = vcmp.lt.s32.totalorder %v1103, 0
        %vm1174 = vcmp.lt.s32.totalorder %v1110, 0
        %vm1175 = vcmp.lt.s32.totalorder %v1117, 0
        %vm1176 = vcmp.lt.s32.totalorder %v1124, 0
        %vm1177 = vcmp.lt.s32.totalorder %v1131, 0
        %vm1178 = vcmp.lt.s32.totalorder %v1138, 0
        %vm1179 = vmand %vm1159, %vm1139
        %vm1180 = vmand %vm1160, %vm1140
        %vm1181 = vmand %vm1161, %vm1141
        %vm1182 = vmand %vm1162, %vm1142
        %vm1183 = vmand %vm1163, %vm1143
        %vm1184 = vmand %vm1164, %vm1144
        %vm1185 = vmand %vm1165, %vm1145
        %vm1186 = vmand %vm1166, %vm1146
        %vm1187 = vmand %vm1167, %vm1147
        %vm1188 = vmand %vm1168, %vm1148
        %vm1189 = vmand %vm1169, %vm1149
        %vm1190 = vmand %vm1170, %vm1150
        %vm1191 = vmand %vm1171, %vm1151
        %vm1192 = vmand %vm1172, %vm1152
        %vm1193 = vmand %vm1173, %vm1153
        %vm1194 = vmand %vm1174, %vm1154
        %vm1195 = vmand %vm1175, %vm1155
        %vm1196 = vmand %vm1176, %vm1156
        %vm1197 = vmand %vm1177, %vm1157
        %vm1198 = vmand %vm1178, %vm1158
        %v1199 = vadd.s32 %v1005, 16
        %v1200 = vadd.s32 %v1012, 16
        %v1201 = vadd.s32 %v1019, 16
        %v1202 = vadd.s32 %v1026, 16
        %v1203 = vadd.s32 %v1033, 16
        %v1204 = vadd.s32 %v1040, 16
        %v1205 = vadd.s32 %v1047, 16
        %v1206 = vadd.s32 %v1054, 16
        %v1207 = vadd.s32 %v1061, 16
        %v1208 = vadd.s32 %v1068, 16
        %v1209 = vadd.s32 %v1075, 16
        %v1210 = vadd.s32 %v1082, 16
        %v1211 = vadd.s32 %v1089, 16
        %v1212 = vadd.s32 %v1096, 16
        %v1213 = vadd.s32 %v1103, 16
        %v1214 = vadd.s32 %v1110, 16
        %v1215 = vadd.s32 %v1117, 16
        %v1216 = vadd.s32 %v1124, 16
        %v1217 = vadd.s32 %v1131, 16
        %v1218 = vadd.s32 %v1138, 16
        %v1219 = vsel %vm1179, %v1199, %v1005
        %v1220 = vsel %vm1180, %v1200, %v1012
        %v1221 = vsel %vm1181, %v1201, %v1019
        %v1222 = vsel %vm1182, %v1202, %v1026
        %v1223 = vsel %vm1183, %v1203, %v1033
        %v1224 = vsel %vm1184, %v1204, %v1040
        %v1225 = vsel %vm1185, %v1205, %v1047
        %v1226 = vsel %vm1186, %v1206, %v1054
        %v1227 = vsel %vm1187, %v1207, %v1061
        %v1228 = vsel %vm1188, %v1208, %v1068
        %v1229 = vsel %vm1189, %v1209, %v1075
        %v1230 = vsel %vm1190, %v1210, %v1082
        %v1231 = vsel %vm1191, %v1211, %v1089
        %v1232 = vsel %vm1192, %v1212, %v1096
        %v1233 = vsel %vm1193, %v1213, %v1103
        %v1234 = vsel %vm1194, %v1214, %v1110
        %v1235 = vsel %vm1195, %v1215, %v1117
        %v1236 = vsel %vm1196, %v1216, %v1124
        %v1237 = vsel %vm1197, %v1217, %v1131
        %v1238 = vsel %vm1198, %v1218, %v1138
        %vm1259 = vcmask 1040384
        %v1260 = vrot.slane %v979, 7
        %v1261 = vrot.slane %v980, 7
        %v1262 = vsel %vm1259, %v1260, %v1261
        %v1263 = vrot.slane %v981, 7
        %v1264 = vsel %vm1259, %v1261, %v1263
        %v1265 = vrot.slane %v982, 7
        %v1266 = vsel %vm1259, %v1263, %v1265
        %v1267 = vrot.slane %v983, 7
        %v1268 = vsel %vm1259, %v1265, %v1267
        %v1269 = vrot.slane %v984, 7
        %v1270 = vsel %vm1259, %v1267, %v1269
        %v1271 = vrot.slane %v985, 7
        %v1272 = vsel %vm1259, %v1269, %v1271
        %v1273 = vrot.slane %v986, 7
        %v1274 = vsel %vm1259, %v1271, %v1273
        %v1275 = vrot.slane %v987, 7
        %v1276 = vsel %vm1259, %v1273, %v1275
        %v1277 = vrot.slane %v988, 7
        %v1278 = vsel %vm1259, %v1275, %v1277
        %v1279 = vrot.slane %v989, 7
        %v1280 = vsel %vm1259, %v1277, %v1279
        %v1281 = vrot.slane %v990, 7
        %v1282 = vsel %vm1259, %v1279, %v1281
        %v1283 = vrot.slane %v991, 7
        %v1284 = vsel %vm1259, %v1281, %v1283
        %v1285 = vrot.slane %v992, 7
        %v1286 = vsel %vm1259, %v1283, %v1285
        %v1287 = vrot.slane %v993, 7
        %v1288 = vsel %vm1259, %v1285, %v1287
        %v1289 = vrot.slane %v994, 7
        %v1290 = vsel %vm1259, %v1287, %v1289
        %v1291 = vrot.slane %v995, 7
        %v1292 = vsel %vm1259, %v1289, %v1291
        %v1293 = vrot.slane %v996, 7
        %v1294 = vsel %vm1259, %v1291, %v1293
        %v1295 = vrot.slane %v997, 7
        %v1296 = vsel %vm1259, %v1293, %v1295
        %v1297 = vrot.slane %v998, 7
        %v1298 = vsel %vm1259, %v1295, %v1297
        %v1319 = vsel %vm1259, 0.0, %v1260
        %vm1320 = vcmask 1046528
        %v1321 = vrot.slane %v979, 1
        %v1322 = vrot.slane %v980, 1
        %v1323 = vsel %vm1320, %v1321, %v1322
        %v1324 = vrot.slane %v981, 1
        %v1325 = vsel %vm1320, %v1322, %v1324
        %v1326 = vrot.slane %v982, 1
        %v1327 = vsel %vm1320, %v1324, %v1326
        %v1328 = vrot.slane %v983, 1
        %v1329 = vsel %vm1320, %v1326, %v1328
        %v1330 = vrot.slane %v984, 1
        %v1331 = vsel %vm1320, %v1328, %v1330
        %v1332 = vrot.slane %v985, 1
        %v1333 = vsel %vm1320, %v1330, %v1332
        %v1334 = vrot.slane %v986, 1
        %v1335 = vsel %vm1320, %v1332, %v1334
        %v1336 = vrot.slane %v987, 1
        %v1337 = vsel %vm1320, %v1334, %v1336
        %v1338 = vrot.slane %v988, 1
        %v1339 = vsel %vm1320, %v1336, %v1338
        %v1340 = vrot.slane %v989, 1
        %v1341 = vsel %vm1320, %v1338, %v1340
        %v1342 = vrot.slane %v990, 1
        %v1343 = vsel %vm1320, %v1340, %v1342
        %v1344 = vrot.slane %v991, 1
        %v1345 = vsel %vm1320, %v1342, %v1344
        %v1346 = vrot.slane %v992, 1
        %v1347 = vsel %vm1320, %v1344, %v1346
        %v1348 = vrot.slane %v993, 1
        %v1349 = vsel %vm1320, %v1346, %v1348
        %v1350 = vrot.slane %v994, 1
        %v1351 = vsel %vm1320, %v1348, %v1350
        %v1352 = vrot.slane %v995, 1
        %v1353 = vsel %vm1320, %v1350, %v1352
        %v1354 = vrot.slane %v996, 1
        %v1355 = vsel %vm1320, %v1352, %v1354
        %v1356 = vrot.slane %v997, 1
        %v1357 = vsel %vm1320, %v1354, %v1356
        %v1358 = vrot.slane %v998, 1
        %v1359 = vsel %vm1320, %v1356, %v1358
        %v1380 = vsel %vm1320, %v1358, 0.0
        %vm1381 = vcmp.eq.s32.totalorder %v1219, 0
        %vm1382 = vcmp.eq.s32.totalorder %v1220, 0
        %vm1383 = vcmp.eq.s32.totalorder %v1221, 0
        %vm1384 = vcmp.eq.s32.totalorder %v1222, 0
        %vm1385 = vcmp.eq.s32.totalorder %v1223, 0
        %vm1386 = vcmp.eq.s32.totalorder %v1224, 0
        %vm1387 = vcmp.eq.s32.totalorder %v1225, 0
        %vm1388 = vcmp.eq.s32.totalorder %v1226, 0
        %vm1389 = vcmp.eq.s32.totalorder %v1227, 0
        %vm1390 = vcmp.eq.s32.totalorder %v1228, 0
        %vm1391 = vcmp.eq.s32.totalorder %v1229, 0
        %vm1392 = vcmp.eq.s32.totalorder %v1230, 0
        %vm1393 = vcmp.eq.s32.totalorder %v1231, 0
        %vm1394 = vcmp.eq.s32.totalorder %v1232, 0
        %vm1395 = vcmp.eq.s32.totalorder %v1233, 0
        %vm1396 = vcmp.eq.s32.totalorder %v1234, 0
        %vm1397 = vcmp.eq.s32.totalorder %v1235, 0
        %vm1398 = vcmp.eq.s32.totalorder %v1236, 0
        %vm1399 = vcmp.eq.s32.totalorder %v1237, 0
        %vm1400 = vcmp.eq.s32.totalorder %v1238, 0
        %v1401 = vsel %vm1381, 1, 0
        %v1402 = vsel %vm1382, 1, 0
        %v1403 = vsel %vm1383, 1, 0
        %v1404 = vsel %vm1384, 1, 0
        %v1405 = vsel %vm1385, 1, 0
        %v1406 = vsel %vm1386, 1, 0
        %v1407 = vsel %vm1387, 1, 0
        %v1408 = vsel %vm1388, 1, 0
        %v1409 = vsel %vm1389, 1, 0
        %v1410 = vsel %vm1390, 1, 0
        %v1411 = vsel %vm1391, 1, 0
        %v1412 = vsel %vm1392, 1, 0
        %v1413 = vsel %vm1393, 1, 0
        %v1414 = vsel %vm1394, 1, 0
        %v1415 = vsel %vm1395, 1, 0
        %v1416 = vsel %vm1396, 1, 0
        %v1417 = vsel %vm1397, 1, 0
        %v1418 = vsel %vm1398, 1, 0
        %v1419 = vsel %vm1399, 1, 0
        %v1420 = vsel %vm1400, 1, 0
        %vm1421 = vcmp.eq.s32.totalorder %v1401, 1
        %vm1422 = vcmp.eq.s32.totalorder %v1402, 1
        %vm1423 = vcmp.eq.s32.totalorder %v1403, 1
        %vm1424 = vcmp.eq.s32.totalorder %v1404, 1
        %vm1425 = vcmp.eq.s32.totalorder %v1405, 1
        %vm1426 = vcmp.eq.s32.totalorder %v1406, 1
        %vm1427 = vcmp.eq.s32.totalorder %v1407, 1
        %vm1428 = vcmp.eq.s32.totalorder %v1408, 1
        %vm1429 = vcmp.eq.s32.totalorder %v1409, 1
        %vm1430 = vcmp.eq.s32.totalorder %v1410, 1
        %vm1431 = vcmp.eq.s32.totalorder %v1411, 1
        %vm1432 = vcmp.eq.s32.totalorder %v1412, 1
        %vm1433 = vcmp.eq.s32.totalorder %v1413, 1
        %vm1434 = vcmp.eq.s32.totalorder %v1414, 1
        %vm1435 = vcmp.eq.s32.totalorder %v1415, 1
        %vm1436 = vcmp.eq.s32.totalorder %v1416, 1
        %vm1437 = vcmp.eq.s32.totalorder %v1417, 1
        %vm1438 = vcmp.eq.s32.totalorder %v1418, 1
        %vm1439 = vcmp.eq.s32.totalorder %v1419, 1
        %vm1440 = vcmp.eq.s32.totalorder %v1420, 1
        %v1441 = vsel %vm1421, 0.0, %v1319
        %v1442 = vsel %vm1422, 0.0, %v1262
        %v1443 = vsel %vm1423, 0.0, %v1264
        %v1444 = vsel %vm1424, 0.0, %v1266
        %v1445 = vsel %vm1425, 0.0, %v1268
        %v1446 = vsel %vm1426, 0.0, %v1270
        %v1447 = vsel %vm1427, 0.0, %v1272
        %v1448 = vsel %vm1428, 0.0, %v1274
        %v1449 = vsel %vm1429, 0.0, %v1276
        %v1450 = vsel %vm1430, 0.0, %v1278
        %v1451 = vsel %vm1431, 0.0, %v1280
        %v1452 = vsel %vm1432, 0.0, %v1282
        %v1453 = vsel %vm1433, 0.0, %v1284
        %v1454 = vsel %vm1434, 0.0, %v1286
        %v1455 = vsel %vm1435, 0.0, %v1288
        %v1456 = vsel %vm1436, 0.0, %v1290
        %v1457 = vsel %vm1437, 0.0, %v1292
        %v1458 = vsel %vm1438, 0.0, %v1294
        %v1459 = vsel %vm1439, 0.0, %v1296
        %v1460 = vsel %vm1440, 0.0, %v1298
        %vm1461 = vcmp.eq.s32.totalorder %v1219, 15
        %vm1462 = vcmp.eq.s32.totalorder %v1220, 15
        %vm1463 = vcmp.eq.s32.totalorder %v1221, 15
        %vm1464 = vcmp.eq.s32.totalorder %v1222, 15
        %vm1465 = vcmp.eq.s32.totalorder %v1223, 15
        %vm1466 = vcmp.eq.s32.totalorder %v1224, 15
        %vm1467 = vcmp.eq.s32.totalorder %v1225, 15
        %vm1468 = vcmp.eq.s32.totalorder %v1226, 15
        %vm1469 = vcmp.eq.s32.totalorder %v1227, 15
        %vm1470 = vcmp.eq.s32.totalorder %v1228, 15
        %vm1471 = vcmp.eq.s32.totalorder %v1229, 15
        %vm1472 = vcmp.eq.s32.totalorder %v1230, 15
        %vm1473 = vcmp.eq.s32.totalorder %v1231, 15
        %vm1474 = vcmp.eq.s32.totalorder %v1232, 15
        %vm1475 = vcmp.eq.s32.totalorder %v1233, 15
        %vm1476 = vcmp.eq.s32.totalorder %v1234, 15
        %vm1477 = vcmp.eq.s32.totalorder %v1235, 15
        %vm1478 = vcmp.eq.s32.totalorder %v1236, 15
        %vm1479 = vcmp.eq.s32.totalorder %v1237, 15
        %vm1480 = vcmp.eq.s32.totalorder %v1238, 15
        %v1481 = vsel %vm1461, 1, 0
        %v1482 = vsel %vm1462, 1, 0
        %v1483 = vsel %vm1463, 1, 0
        %v1484 = vsel %vm1464, 1, 0
        %v1485 = vsel %vm1465, 1, 0
        %v1486 = vsel %vm1466, 1, 0
        %v1487 = vsel %vm1467, 1, 0
        %v1488 = vsel %vm1468, 1, 0
        %v1489 = vsel %vm1469, 1, 0
        %v1490 = vsel %vm1470, 1, 0
        %v1491 = vsel %vm1471, 1, 0
        %v1492 = vsel %vm1472, 1, 0
        %v1493 = vsel %vm1473, 1, 0
        %v1494 = vsel %vm1474, 1, 0
        %v1495 = vsel %vm1475, 1, 0
        %v1496 = vsel %vm1476, 1, 0
        %v1497 = vsel %vm1477, 1, 0
        %v1498 = vsel %vm1478, 1, 0
        %v1499 = vsel %vm1479, 1, 0
        %v1500 = vsel %vm1480, 1, 0
        %vm1501 = vcmp.eq.s32.totalorder %v1481, 1
        %vm1502 = vcmp.eq.s32.totalorder %v1482, 1
        %vm1503 = vcmp.eq.s32.totalorder %v1483, 1
        %vm1504 = vcmp.eq.s32.totalorder %v1484, 1
        %vm1505 = vcmp.eq.s32.totalorder %v1485, 1
        %vm1506 = vcmp.eq.s32.totalorder %v1486, 1
        %vm1507 = vcmp.eq.s32.totalorder %v1487, 1
        %vm1508 = vcmp.eq.s32.totalorder %v1488, 1
        %vm1509 = vcmp.eq.s32.totalorder %v1489, 1
        %vm1510 = vcmp.eq.s32.totalorder %v1490, 1
        %vm1511 = vcmp.eq.s32.totalorder %v1491, 1
        %vm1512 = vcmp.eq.s32.totalorder %v1492, 1
        %vm1513 = vcmp.eq.s32.totalorder %v1493, 1
        %vm1514 = vcmp.eq.s32.totalorder %v1494, 1
        %vm1515 = vcmp.eq.s32.totalorder %v1495, 1
        %vm1516 = vcmp.eq.s32.totalorder %v1496, 1
        %vm1517 = vcmp.eq.s32.totalorder %v1497, 1
        %vm1518 = vcmp.eq.s32.totalorder %v1498, 1
        %vm1519 = vcmp.eq.s32.totalorder %v1499, 1
        %vm1520 = vcmp.eq.s32.totalorder %v1500, 1
        %v1521 = vsel %vm1501, 0.0, %v1323
        %v1522 = vsel %vm1502, 0.0, %v1325
        %v1523 = vsel %vm1503, 0.0, %v1327
        %v1524 = vsel %vm1504, 0.0, %v1329
        %v1525 = vsel %vm1505, 0.0, %v1331
        %v1526 = vsel %vm1506, 0.0, %v1333
        %v1527 = vsel %vm1507, 0.0, %v1335
        %v1528 = vsel %vm1508, 0.0, %v1337
        %v1529 = vsel %vm1509, 0.0, %v1339
        %v1530 = vsel %vm1510, 0.0, %v1341
        %v1531 = vsel %vm1511, 0.0, %v1343
        %v1532 = vsel %vm1512, 0.0, %v1345
        %v1533 = vsel %vm1513, 0.0, %v1347
        %v1534 = vsel %vm1514, 0.0, %v1349
        %v1535 = vsel %vm1515, 0.0, %v1351
        %v1536 = vsel %vm1516, 0.0, %v1353
        %v1537 = vsel %vm1517, 0.0, %v1355
        %v1538 = vsel %vm1518, 0.0, %v1357
        %v1539 = vsel %vm1519, 0.0, %v1359
        %v1540 = vsel %vm1520, 0.0, %v1380
        %1541 = vrot.lane.b32.xlu0 %v979, 32
        %v1542 = vpop.permute.xlu0 %1541
        %1543 = vrot.lane.b32.xlu0 %v980, 32
        %v1544 = vpop.permute.xlu0 %1543
        %1545 = vrot.lane.b32.xlu0 %v981, 32
        %v1546 = vpop.permute.xlu0 %1545
        %1547 = vrot.lane.b32.xlu0 %v982, 32
        %v1548 = vpop.permute.xlu0 %1547
        %1549 = vrot.lane.b32.xlu0 %v983, 32
        %v1550 = vpop.permute.xlu0 %1549
        %1551 = vrot.lane.b32.xlu0 %v984, 32
        %v1552 = vpop.permute.xlu0 %1551
        %1553 = vrot.lane.b32.xlu0 %v985, 32
        %v1554 = vpop.permute.xlu0 %1553
        %1555 = vrot.lane.b32.xlu0 %v986, 32
        %v1556 = vpop.permute.xlu0 %1555
        %1557 = vrot.lane.b32.xlu0 %v987, 32
        %v1558 = vpop.permute.xlu0 %1557
        %1559 = vrot.lane.b32.xlu0 %v988, 32
        %v1560 = vpop.permute.xlu0 %1559
        %1561 = vrot.lane.b32.xlu0 %v989, 32
        %v1562 = vpop.permute.xlu0 %1561
        %1563 = vrot.lane.b32.xlu0 %v990, 32
        %v1564 = vpop.permute.xlu0 %1563
        %1565 = vrot.lane.b32.xlu0 %v991, 32
        %v1566 = vpop.permute.xlu0 %1565
        %1567 = vrot.lane.b32.xlu0 %v992, 32
        %v1568 = vpop.permute.xlu0 %1567
        %1569 = vrot.lane.b32.xlu0 %v993, 32
        %v1570 = vpop.permute.xlu0 %1569
        %1571 = vrot.lane.b32.xlu0 %v994, 32
        %v1572 = vpop.permute.xlu0 %1571
        %1573 = vrot.lane.b32.xlu0 %v995, 32
        %v1574 = vpop.permute.xlu0 %1573
        %1575 = vrot.lane.b32.xlu0 %v996, 32
        %v1576 = vpop.permute.xlu0 %1575
        %1577 = vrot.lane.b32.xlu0 %v997, 32
        %v1578 = vpop.permute.xlu0 %1577
        %1579 = vrot.lane.b32.xlu0 %v998, 32
        %v1580 = vpop.permute.xlu0 %1579
        %1621 = vrot.lane.b32.xlu0 %v1521, 64
        %v1622 = vpop.permute.xlu0 %1621
        %1623 = vrot.lane.b32.xlu0 %v1522, 64
        %v1624 = vpop.permute.xlu0 %1623
        %1625 = vrot.lane.b32.xlu0 %v1523, 64
        %v1626 = vpop.permute.xlu0 %1625
        %1627 = vrot.lane.b32.xlu0 %v1524, 64
        %v1628 = vpop.permute.xlu0 %1627
        %1629 = vrot.lane.b32.xlu0 %v1525, 64
        %v1630 = vpop.permute.xlu0 %1629
        %1631 = vrot.lane.b32.xlu0 %v1526, 64
        %v1632 = vpop.permute.xlu0 %1631
        %1633 = vrot.lane.b32.xlu0 %v1527, 64
        %v1634 = vpop.permute.xlu0 %1633
        %1635 = vrot.lane.b32.xlu0 %v1528, 64
        %v1636 = vpop.permute.xlu0 %1635
        %1637 = vrot.lane.b32.xlu0 %v1529, 64
        %v1638 = vpop.permute.xlu0 %1637
        %1639 = vrot.lane.b32.xlu0 %v1530, 64
        %v1640 = vpop.permute.xlu0 %1639
        %1641 = vrot.lane.b32.xlu0 %v1531, 64
        %v1642 = vpop.permute.xlu0 %1641
        %1643 = vrot.lane.b32.xlu0 %v1532, 64
        %v1644 = vpop.permute.xlu0 %1643
        %1645 = vrot.lane.b32.xlu0 %v1533, 64
        %v1646 = vpop.permute.xlu0 %1645
        %1647 = vrot.lane.b32.xlu0 %v1534, 64
        %v1648 = vpop.permute.xlu0 %1647
        %1649 = vrot.lane.b32.xlu0 %v1535, 64
        %v1650 = vpop.permute.xlu0 %1649
        %1651 = vrot.lane.b32.xlu0 %v1536, 64
        %v1652 = vpop.permute.xlu0 %1651
        %1653 = vrot.lane.b32.xlu0 %v1537, 64
        %v1654 = vpop.permute.xlu0 %1653
        %1655 = vrot.lane.b32.xlu0 %v1538, 64
        %v1656 = vpop.permute.xlu0 %1655
        %1657 = vrot.lane.b32.xlu0 %v1539, 64
        %v1658 = vpop.permute.xlu0 %1657
        %1659 = vrot.lane.b32.xlu0 %v1540, 64
        %v1660 = vpop.permute.xlu0 %1659
        %vm1681 = vcmask 261120
        %v1682 = vsel %vm1681, %v1441, %v1542
        %v1683 = vsel %vm1681, %v1442, %v1544
        %v1684 = vsel %vm1681, %v1443, %v1546
        %v1685 = vsel %vm1681, %v1444, %v1548
        %v1686 = vsel %vm1681, %v1445, %v1550
        %v1687 = vsel %vm1681, %v1446, %v1552
        %v1688 = vsel %vm1681, %v1447, %v1554
        %v1689 = vsel %vm1681, %v1448, %v1556
        %v1690 = vsel %vm1681, %v1449, %v1558
        %v1691 = vsel %vm1681, %v1450, %v1560
        %v1692 = vsel %vm1681, %v1451, %v1562
        %v1693 = vsel %vm1681, %v1452, %v1564
        %v1694 = vsel %vm1681, %v1453, %v1566
        %v1695 = vsel %vm1681, %v1454, %v1568
        %v1696 = vsel %vm1681, %v1455, %v1570
        %v1697 = vsel %vm1681, %v1456, %v1572
        %v1698 = vsel %vm1681, %v1457, %v1574
        %v1699 = vsel %vm1681, %v1458, %v1576
        %v1700 = vsel %vm1681, %v1459, %v1578
        %v1701 = vsel %vm1681, %v1460, %v1580
        %vm1702 = vcmask 523264
        %v1703 = vsel %vm1702, %v1682, %v1622
        %v1704 = vsel %vm1702, %v1683, %v1624
        %v1705 = vsel %vm1702, %v1684, %v1626
        %v1706 = vsel %vm1702, %v1685, %v1628
        %v1707 = vsel %vm1702, %v1686, %v1630
        %v1708 = vsel %vm1702, %v1687, %v1632
        %v1709 = vsel %vm1702, %v1688, %v1634
        %v1710 = vsel %vm1702, %v1689, %v1636
        %v1711 = vsel %vm1702, %v1690, %v1638
        %v1712 = vsel %vm1702, %v1691, %v1640
        %v1713 = vsel %vm1702, %v1692, %v1642
        %v1714 = vsel %vm1702, %v1693, %v1644
        %v1715 = vsel %vm1702, %v1694, %v1646
        %v1716 = vsel %vm1702, %v1695, %v1648
        %v1717 = vsel %vm1702, %v1696, %v1650
        %v1718 = vsel %vm1702, %v1697, %v1652
        %v1719 = vsel %vm1702, %v1698, %v1654
        %v1720 = vsel %vm1702, %v1699, %v1656
        %v1721 = vsel %vm1702, %v1700, %v1658
        %v1722 = vsel %vm1702, %v1701, %v1660
        %v1723 = vpack.c.bf16 %v1704, %v1703
        %v1724 = vpack.c.bf16 %v1706, %v1705
        %v1725 = vpack.c.bf16 %v1708, %v1707
        %v1726 = vpack.c.bf16 %v1710, %v1709
        %v1727 = vpack.c.bf16 %v1712, %v1711
        %v1728 = vpack.c.bf16 %v1714, %v1713
        %v1729 = vpack.c.bf16 %v1716, %v1715
        %v1730 = vpack.c.bf16 %v1718, %v1717
        %v1731 = vpack.c.bf16 %v1720, %v1719
        %v1732 = vpack.c.bf16 %v1722, %v1721
        %v1733 = vld [vmem:[%s4] sm:$0xf]
        %v1734 = vld [vmem:[%s4 + $0x4] sm:$0xf]
        %v1735 = vld [vmem:[%s4 + $0x8] sm:$0xf]
        %v1736 = vld [vmem:[%s4 + $0xc] sm:$0xf]
        %v1737 = vld [vmem:[%s4 + $0x10] sm:$0xf]
        %v1738 = vld [vmem:[%s4 + $0x14] sm:$0xf]
        %v1739 = vld [vmem:[%s4 + $0x18] sm:$0xf]
        %v1740 = vld [vmem:[%s4 + $0x1c] sm:$0xf]
        %v1741 = vld [vmem:[%s4 + $0x20] sm:$0xf]
        %v1742 = vld [vmem:[%s4 + $0x24] sm:$0xf]
        %v1743 = vld [vmem:[%s4 + $0x28] sm:$0xf]
        %v1744 = vld [vmem:[%s4 + $0x2c] sm:$0xf]
        %s1745 = scalar_lea.vmem %s4, 48
        %v1746 = vld [vmem:[%s1745] sm:$0xf]
        %v1747 = vld [vmem:[%s1745 + $0x4] sm:$0xf]
        %v1748 = vld [vmem:[%s1745 + $0x8] sm:$0xf]
        %v1749 = vld [vmem:[%s1745 + $0xc] sm:$0xf]
        %v1750 = vld [vmem:[%s1745 + $0x10] sm:$0xf]
        %v1751 = vld [vmem:[%s1745 + $0x14] sm:$0xf]
        %v1752 = vld [vmem:[%s1745 + $0x18] sm:$0xf]
        %v1753 = vld [vmem:[%s1745 + $0x1c] sm:$0xf]
        %v1754 = vld [vmem:[%s1745 + $0x20] sm:$0xf]
        %v1755 = vld [vmem:[%s1745 + $0x24] sm:$0xf]
        %v1756 = vld [vmem:[%s1745 + $0x28] sm:$0xf]
        %v1757 = vld [vmem:[%s1745 + $0x2c] sm:$0xf]
        %v1770 = vunpack.c.l.b16 %v1746
        %v1771 = vunpack.c.l.b16 %v1747
        %v1772 = vunpack.c.l.b16 %v1748
        %v1773 = vunpack.c.l.b16 %v1749
        %v1774 = vunpack.c.l.b16 %v1750
        %v1775 = vunpack.c.l.b16 %v1751
        %v1776 = vunpack.c.l.b16 %v1752
        %v1777 = vunpack.c.l.b16 %v1753
        %v1778 = vunpack.c.l.b16 %v1754
        %v1779 = vunpack.c.l.b16 %v1755
        %v1780 = vunpack.c.l.b16 %v1756
        %v1781 = vunpack.c.l.b16 %v1757
        %v1782 = vpack.c.b16 %v1771, %v1770
        %v1783 = vpack.c.b16 %v1773, %v1772
        %v1784 = vpack.c.b16 %v1775, %v1774
        %v1785 = vpack.c.b16 %v1777, %v1776
        %v1786 = vpack.c.b16 %v1779, %v1778
        %v1787 = vpack.c.b16 %v1781, %v1780
        %vm1794 = vcmask 785408
        %v1796 = vsel %vm1794, %v1724, 0
        %v1799 = vsel %vm1794, %v1725, 0
        %v1802 = vsel %vm1794, %v1726, 0
        %v1805 = vsel %vm1794, %v1727, 0
        %v1808 = vsel %vm1794, %v1728, 0
        %v1811 = vsel %vm1794, %v1729, 0
        %v1814 = vsel %vm1794, %v1730, 0
        %v1817 = vsel %vm1794, %v1731, 0
        %1819 = vmatprep.subr.bf16.mxu0 0
        %1820 = vmatpush1.bf16.msra.mxu0 %v1782
        %1821 = vmatprep.subr.bf16.mxu0 0
        %1822 = vmatpush1.bf16.msra.mxu0 %v1783
        %1823 = vmatprep.subr.bf16.mxu0 0
        %1824 = vmatpush1.bf16.msra.mxu0 %v1784
        %1825 = vmatprep.subr.bf16.mxu0 0
        %1826 = vmatpush1.bf16.msra.mxu0 %v1785
        %1827 = vmatprep.subr.bf16.mxu0 0
        %1828 = vmatpush1.bf16.msra.mxu0 %v1786
        %1829 = vmatprep.subr.bf16.mxu0 0
        %1830 = vmatpush1.bf16.msra.mxu0 %v1787
        %1831 = vmatprep.subr.bf16.mxu0 0
        %1832 = vmatpush1.bf16.msra.mxu0 0
        %1833 = vmatprep.subr.bf16.mxu0 0
        %1834 = vmatpush1.bf16.msra.mxu0 0
        %1835 = vmatprep.subr.bf16.mxu0 0
        %1836 = vmatpush1.bf16.msra.mxu0 0
        %1837 = vmatprep.subr.bf16.mxu0 0
        %1838 = vmatpush1.bf16.msra.mxu0 0
        %1839 = vmatprep.subr.bf16.mxu0 0
        %1840 = vmatpush1.bf16.msra.mxu0 0
        %1841 = vmatprep.subr.bf16.mxu0 0
        %1842 = vmatpush1.bf16.msra.mxu0 0
        %1843 = vmatprep.subr.bf16.mxu0 0
        %1844 = vmatpush1.bf16.msra.mxu0 0
        %1845 = vmatprep.subr.bf16.mxu0 0
        %1846 = vmatpush1.bf16.msra.mxu0 0
        %1847 = vmatprep.subr.bf16.mxu0 0
        %1848 = vmatpush1.bf16.msra.mxu0 0
        %1849 = vmatprep.subr.bf16.mxu0 0
        %1850 = vmatpush1.bf16.msra.mxu0 0
        %1851 = vmatprep.mubr.bf16.mxu0 0
        %1852 = vmatmul.mubr.bf16.gmra.mrb[0].mxu0 %v1796
        %v1853 = vpop.f32.mrb[0].mxu0
        %v1854 = vadd.f32 0.0, %v1853
        %v1855 = vpop.f32.mrb[0].mxu0
        %v1856 = vpop.f32.mrb[0].mxu0
        %v1857 = vadd.f32 0.0, %v1856
        %v1858 = vpop.f32.mrb[0].mxu0
        %1859 = vmatprep.mubr.bf16.mxu0 0
        %1860 = vmatmul.mubr.bf16.gmra.mrb[0].mxu0 %v1799
        %v1861 = vpop.f32.mrb[0].mxu0
        %v1862 = vadd.f32 0.0, %v1861
        %v1863 = vpop.f32.mrb[0].mxu0
        %v1864 = vpop.f32.mrb[0].mxu0
        %v1865 = vadd.f32 0.0, %v1864
        %v1866 = vpop.f32.mrb[0].mxu0
        %1867 = vmatprep.mubr.bf16.mxu0 0
        %1868 = vmatmul.mubr.bf16.gmra.mrb[0].mxu0 %v1802
        %v1869 = vpop.f32.mrb[0].mxu0
        %v1870 = vadd.f32 0.0, %v1869
        %v1871 = vpop.f32.mrb[0].mxu0
        %v1872 = vpop.f32.mrb[0].mxu0
        %v1873 = vadd.f32 0.0, %v1872
        %v1874 = vpop.f32.mrb[0].mxu0
        %1875 = vmatprep.mubr.bf16.mxu0 0
        %1876 = vmatmul.mubr.bf16.gmra.mrb[0].mxu0 %v1805
        %v1877 = vpop.f32.mrb[0].mxu0
        %v1878 = vadd.f32 0.0, %v1877
        %v1879 = vpop.f32.mrb[0].mxu0
        %v1880 = vpop.f32.mrb[0].mxu0
        %v1881 = vadd.f32 0.0, %v1880
        %v1882 = vpop.f32.mrb[0].mxu0
        %1883 = vmatprep.mubr.bf16.mxu0 0
        %1884 = vmatmul.mubr.bf16.gmra.mrb[0].mxu0 %v1808
        %v1885 = vpop.f32.mrb[0].mxu0
        %v1886 = vadd.f32 0.0, %v1885
        %v1887 = vpop.f32.mrb[0].mxu0
        %v1888 = vpop.f32.mrb[0].mxu0
        %v1889 = vadd.f32 0.0, %v1888
        %v1890 = vpop.f32.mrb[0].mxu0
        %1891 = vmatprep.mubr.bf16.mxu0 0
        %1892 = vmatmul.mubr.bf16.gmra.mrb[0].mxu0 %v1811
        %v1893 = vpop.f32.mrb[0].mxu0
        %v1894 = vadd.f32 0.0, %v1893
        %v1895 = vpop.f32.mrb[0].mxu0
        %v1896 = vpop.f32.mrb[0].mxu0
        %v1897 = vadd.f32 0.0, %v1896
        %v1898 = vpop.f32.mrb[0].mxu0
        %1899 = vmatprep.mubr.bf16.mxu0 0
        %1900 = vmatmul.mubr.bf16.gmra.mrb[0].mxu0 %v1814
        %v1901 = vpop.f32.mrb[0].mxu0
        %v1902 = vadd.f32 0.0, %v1901
        %v1903 = vpop.f32.mrb[0].mxu0
        %v1904 = vpop.f32.mrb[0].mxu0
        %v1905 = vadd.f32 0.0, %v1904
        %v1906 = vpop.f32.mrb[0].mxu0
        %1907 = vmatprep.mubr.bf16.mxu0 0
        %1908 = vmatmul.mubr.bf16.gmra.mrb[0].mxu0 %v1817
        %v1909 = vpop.f32.mrb[0].mxu0
        %v1910 = vadd.f32 0.0, %v1909
        %v1911 = vpop.f32.mrb[0].mxu0
        %v1912 = vpop.f32.mrb[0].mxu0
        %v1913 = vadd.f32 0.0, %v1912
        %v1914 = vpop.f32.mrb[0].mxu0
        %1915 = vdwg.mxu0
        %v1928 = vunpack.c.l.b16 %v1733
        %v1929 = vunpack.c.l.b16 %v1734
        %v1930 = vunpack.c.l.b16 %v1735
        %v1931 = vunpack.c.l.b16 %v1736
        %v1932 = vunpack.c.l.b16 %v1737
        %v1933 = vunpack.c.l.b16 %v1738
        %v1934 = vunpack.c.l.b16 %v1739
        %v1935 = vunpack.c.l.b16 %v1740
        %v1936 = vunpack.c.l.b16 %v1741
        %v1937 = vunpack.c.l.b16 %v1742
        %v1938 = vunpack.c.l.b16 %v1743
        %v1939 = vunpack.c.l.b16 %v1744
        %v1940 = vpack.c.b16 %v1929, %v1928
        %v1941 = vpack.c.b16 %v1931, %v1930
        %v1942 = vpack.c.b16 %v1933, %v1932
        %v1943 = vpack.c.b16 %v1935, %v1934
        %v1944 = vpack.c.b16 %v1937, %v1936
        %v1945 = vpack.c.b16 %v1939, %v1938
        %v1953 = vsel %vm1794, %v1723, 0
        %1955 = vmatprep.subr.bf16.mxu0 0
        %1956 = vmatpush1.bf16.msra.mxu0 %v1940
        %1957 = vmatprep.subr.bf16.mxu0 0
        %1958 = vmatpush1.bf16.msra.mxu0 %v1941
        %1959 = vmatprep.subr.bf16.mxu0 0
        %1960 = vmatpush1.bf16.msra.mxu0 %v1942
        %1961 = vmatprep.subr.bf16.mxu0 0
        %1962 = vmatpush1.bf16.msra.mxu0 %v1943
        %1963 = vmatprep.subr.bf16.mxu0 0
        %1964 = vmatpush1.bf16.msra.mxu0 %v1944
        %1965 = vmatprep.subr.bf16.mxu0 0
        %1966 = vmatpush1.bf16.msra.mxu0 %v1945
        %1967 = vmatprep.subr.bf16.mxu0 0
        %1968 = vmatpush1.bf16.msra.mxu0 0
        %1969 = vmatprep.subr.bf16.mxu0 0
        %1970 = vmatpush1.bf16.msra.mxu0 0
        %1971 = vmatprep.subr.bf16.mxu0 0
        %1972 = vmatpush1.bf16.msra.mxu0 0
        %1973 = vmatprep.subr.bf16.mxu0 0
        %1974 = vmatpush1.bf16.msra.mxu0 0
        %1975 = vmatprep.subr.bf16.mxu0 0
        %1976 = vmatpush1.bf16.msra.mxu0 0
        %1977 = vmatprep.subr.bf16.mxu0 0
        %1978 = vmatpush1.bf16.msra.mxu0 0
        %1979 = vmatprep.subr.bf16.mxu0 0
        %1980 = vmatpush1.bf16.msra.mxu0 0
        %1981 = vmatprep.subr.bf16.mxu0 0
        %1982 = vmatpush1.bf16.msra.mxu0 0
        %1983 = vmatprep.subr.bf16.mxu0 0
        %1984 = vmatpush1.bf16.msra.mxu0 0
        %1985 = vmatprep.subr.bf16.mxu0 0
        %1986 = vmatpush1.bf16.msra.mxu0 0
        %1987 = vmatprep.mubr.bf16.mxu0 0
        %1988 = vmatmul.mubr.bf16.gmra.mrb[0].mxu0 %v1953
        %v1989 = vpop.f32.mrb[0].mxu0
        %v1990 = vadd.f32 %v1854, %v1989
        %v1991 = vpop.f32.mrb[0].mxu0
        %v1992 = vpop.f32.mrb[0].mxu0
        %v1993 = vadd.f32 %v1857, %v1992
        %v1994 = vpop.f32.mrb[0].mxu0
        %1995 = vmatprep.mubr.bf16.mxu0 0
        %1996 = vmatmul.mubr.bf16.gmra.mrb[0].mxu0 %v1796
        %v1997 = vpop.f32.mrb[0].mxu0
        %v1998 = vadd.f32 %v1862, %v1997
        %v1999 = vpop.f32.mrb[0].mxu0
        %v2000 = vpop.f32.mrb[0].mxu0
        %v2001 = vadd.f32 %v1865, %v2000
        %v2002 = vpop.f32.mrb[0].mxu0
        %2003 = vmatprep.mubr.bf16.mxu0 0
        %2004 = vmatmul.mubr.bf16.gmra.mrb[0].mxu0 %v1799
        %v2005 = vpop.f32.mrb[0].mxu0
        %v2006 = vadd.f32 %v1870, %v2005
        %v2007 = vpop.f32.mrb[0].mxu0
        %v2008 = vpop.f32.mrb[0].mxu0
        %v2009 = vadd.f32 %v1873, %v2008
        %v2010 = vpop.f32.mrb[0].mxu0
        %2011 = vmatprep.mubr.bf16.mxu0 0
        %2012 = vmatmul.mubr.bf16.gmra.mrb[0].mxu0 %v1802
        %v2013 = vpop.f32.mrb[0].mxu0
        %v2014 = vadd.f32 %v1878, %v2013
        %v2015 = vpop.f32.mrb[0].mxu0
        %v2016 = vpop.f32.mrb[0].mxu0
        %v2017 = vadd.f32 %v1881, %v2016
        %v2018 = vpop.f32.mrb[0].mxu0
        %2019 = vmatprep.mubr.bf16.mxu0 0
        %2020 = vmatmul.mubr.bf16.gmra.mrb[0].mxu0 %v1805
        %v2021 = vpop.f32.mrb[0].mxu0
        %v2022 = vadd.f32 %v1886, %v2021
        %v2023 = vpop.f32.mrb[0].mxu0
        %v2024 = vpop.f32.mrb[0].mxu0
        %v2025 = vadd.f32 %v1889, %v2024
        %v2026 = vpop.f32.mrb[0].mxu0
        %2027 = vmatprep.mubr.bf16.mxu0 0
        %2028 = vmatmul.mubr.bf16.gmra.mrb[0].mxu0 %v1808
        %v2029 = vpop.f32.mrb[0].mxu0
        %v2030 = vadd.f32 %v1894, %v2029
        %v2031 = vpop.f32.mrb[0].mxu0
        %v2032 = vpop.f32.mrb[0].mxu0
        %v2033 = vadd.f32 %v1897, %v2032
        %v2034 = vpop.f32.mrb[0].mxu0
        %2035 = vmatprep.mubr.bf16.mxu0 0
        %2036 = vmatmul.mubr.bf16.gmra.mrb[0].mxu0 %v1811
        %v2037 = vpop.f32.mrb[0].mxu0
        %v2038 = vadd.f32 %v1902, %v2037
        %v2039 = vpop.f32.mrb[0].mxu0
        %v2040 = vpop.f32.mrb[0].mxu0
        %v2041 = vadd.f32 %v1905, %v2040
        %v2042 = vpop.f32.mrb[0].mxu0
        %2043 = vmatprep.mubr.bf16.mxu0 0
        %2044 = vmatmul.mubr.bf16.gmra.mrb[0].mxu0 %v1814
        %v2045 = vpop.f32.mrb[0].mxu0
        %v2046 = vadd.f32 %v1910, %v2045
        %v2047 = vpop.f32.mrb[0].mxu0
        %v2048 = vpop.f32.mrb[0].mxu0
        %v2049 = vadd.f32 %v1913, %v2048
        %v2050 = vpop.f32.mrb[0].mxu0
        %2051 = vdwg.mxu0
        %s2052 = scalar_lea.vmem %s4, 96
        %v2053 = vld [vmem:[%s2052] sm:$0xf]
        %v2054 = vld [vmem:[%s2052 + $0x4] sm:$0xf]
        %v2055 = vld [vmem:[%s2052 + $0x8] sm:$0xf]
        %v2056 = vld [vmem:[%s2052 + $0xc] sm:$0xf]
        %v2057 = vld [vmem:[%s2052 + $0x10] sm:$0xf]
        %v2058 = vld [vmem:[%s2052 + $0x14] sm:$0xf]
        %v2059 = vld [vmem:[%s2052 + $0x18] sm:$0xf]
        %v2060 = vld [vmem:[%s2052 + $0x1c] sm:$0xf]
        %v2061 = vld [vmem:[%s2052 + $0x20] sm:$0xf]
        %v2062 = vld [vmem:[%s2052 + $0x24] sm:$0xf]
        %v2063 = vld [vmem:[%s2052 + $0x28] sm:$0xf]
        %v2064 = vld [vmem:[%s2052 + $0x2c] sm:$0xf]
        %v2077 = vunpack.c.l.b16 %v2053
        %v2078 = vunpack.c.l.b16 %v2054
        %v2079 = vunpack.c.l.b16 %v2055
        %v2080 = vunpack.c.l.b16 %v2056
        %v2081 = vunpack.c.l.b16 %v2057
        %v2082 = vunpack.c.l.b16 %v2058
        %v2083 = vunpack.c.l.b16 %v2059
        %v2084 = vunpack.c.l.b16 %v2060
        %v2085 = vunpack.c.l.b16 %v2061
        %v2086 = vunpack.c.l.b16 %v2062
        %v2087 = vunpack.c.l.b16 %v2063
        %v2088 = vunpack.c.l.b16 %v2064
        %v2089 = vpack.c.b16 %v2078, %v2077
        %v2090 = vpack.c.b16 %v2080, %v2079
        %v2091 = vpack.c.b16 %v2082, %v2081
        %v2092 = vpack.c.b16 %v2084, %v2083
        %v2093 = vpack.c.b16 %v2086, %v2085
        %v2094 = vpack.c.b16 %v2088, %v2087
        %v2102 = vsel %vm1794, %v1732, 0
        %2104 = vmatprep.subr.bf16.mxu0 0
        %2105 = vmatpush1.bf16.msra.mxu0 %v2089
        %2106 = vmatprep.subr.bf16.mxu0 0
        %2107 = vmatpush1.bf16.msra.mxu0 %v2090
        %2108 = vmatprep.subr.bf16.mxu0 0
        %2109 = vmatpush1.bf16.msra.mxu0 %v2091
        %2110 = vmatprep.subr.bf16.mxu0 0
        %2111 = vmatpush1.bf16.msra.mxu0 %v2092
        %2112 = vmatprep.subr.bf16.mxu0 0
        %2113 = vmatpush1.bf16.msra.mxu0 %v2093
        %2114 = vmatprep.subr.bf16.mxu0 0
        %2115 = vmatpush1.bf16.msra.mxu0 %v2094
        %2116 = vmatprep.subr.bf16.mxu0 0
        %2117 = vmatpush1.bf16.msra.mxu0 0
        %2118 = vmatprep.subr.bf16.mxu0 0
        %2119 = vmatpush1.bf16.msra.mxu0 0
        %2120 = vmatprep.subr.bf16.mxu0 0
        %2121 = vmatpush1.bf16.msra.mxu0 0
        %2122 = vmatprep.subr.bf16.mxu0 0
        %2123 = vmatpush1.bf16.msra.mxu0 0
        %2124 = vmatprep.subr.bf16.mxu0 0
        %2125 = vmatpush1.bf16.msra.mxu0 0
        %2126 = vmatprep.subr.bf16.mxu0 0
        %2127 = vmatpush1.bf16.msra.mxu0 0
        %2128 = vmatprep.subr.bf16.mxu0 0
        %2129 = vmatpush1.bf16.msra.mxu0 0
        %2130 = vmatprep.subr.bf16.mxu0 0
        %2131 = vmatpush1.bf16.msra.mxu0 0
        %2132 = vmatprep.subr.bf16.mxu0 0
        %2133 = vmatpush1.bf16.msra.mxu0 0
        %2134 = vmatprep.subr.bf16.mxu0 0
        %2135 = vmatpush1.bf16.msra.mxu0 0
        %2136 = vmatprep.mubr.bf16.mxu0 0
        %2137 = vmatmul.mubr.bf16.gmra.mrb[0].mxu0 %v1799
        %v2138 = vpop.f32.mrb[0].mxu0
        %v2139 = vadd.f32 0.0, %v2138
        %v2140 = vpop.f32.mrb[0].mxu0
        %v2141 = vpop.f32.mrb[0].mxu0
        %v2142 = vadd.f32 0.0, %v2141
        %v2143 = vpop.f32.mrb[0].mxu0
        %2144 = vmatprep.mubr.bf16.mxu0 0
        %2145 = vmatmul.mubr.bf16.gmra.mrb[0].mxu0 %v1802
        %v2146 = vpop.f32.mrb[0].mxu0
        %v2147 = vadd.f32 0.0, %v2146
        %v2148 = vpop.f32.mrb[0].mxu0
        %v2149 = vpop.f32.mrb[0].mxu0
        %v2150 = vadd.f32 0.0, %v2149
        %v2151 = vpop.f32.mrb[0].mxu0
        %2152 = vmatprep.mubr.bf16.mxu0 0
        %2153 = vmatmul.mubr.bf16.gmra.mrb[0].mxu0 %v1805
        %v2154 = vpop.f32.mrb[0].mxu0
        %v2155 = vadd.f32 0.0, %v2154
        %v2156 = vpop.f32.mrb[0].mxu0
        %v2157 = vpop.f32.mrb[0].mxu0
        %v2158 = vadd.f32 0.0, %v2157
        %v2159 = vpop.f32.mrb[0].mxu0
        %2160 = vmatprep.mubr.bf16.mxu0 0
        %2161 = vmatmul.mubr.bf16.gmra.mrb[0].mxu0 %v1808
        %v2162 = vpop.f32.mrb[0].mxu0
        %v2163 = vadd.f32 0.0, %v2162
        %v2164 = vpop.f32.mrb[0].mxu0
        %v2165 = vpop.f32.mrb[0].mxu0
        %v2166 = vadd.f32 0.0, %v2165
        %v2167 = vpop.f32.mrb[0].mxu0
        %2168 = vmatprep.mubr.bf16.mxu0 0
        %2169 = vmatmul.mubr.bf16.gmra.mrb[0].mxu0 %v1811
        %v2170 = vpop.f32.mrb[0].mxu0
        %v2171 = vadd.f32 0.0, %v2170
        %v2172 = vpop.f32.mrb[0].mxu0
        %v2173 = vpop.f32.mrb[0].mxu0
        %v2174 = vadd.f32 0.0, %v2173
        %v2175 = vpop.f32.mrb[0].mxu0
        %2176 = vmatprep.mubr.bf16.mxu0 0
        %2177 = vmatmul.mubr.bf16.gmra.mrb[0].mxu0 %v1814
        %v2178 = vpop.f32.mrb[0].mxu0
        %v2179 = vadd.f32 0.0, %v2178
        %v2180 = vpop.f32.mrb[0].mxu0
        %v2181 = vpop.f32.mrb[0].mxu0
        %v2182 = vadd.f32 0.0, %v2181
        %v2183 = vpop.f32.mrb[0].mxu0
        %2184 = vmatprep.mubr.bf16.mxu0 0
        %2185 = vmatmul.mubr.bf16.gmra.mrb[0].mxu0 %v1817
        %v2186 = vpop.f32.mrb[0].mxu0
        %v2187 = vadd.f32 0.0, %v2186
        %v2188 = vpop.f32.mrb[0].mxu0
        %v2189 = vpop.f32.mrb[0].mxu0
        %v2190 = vadd.f32 0.0, %v2189
        %v2191 = vpop.f32.mrb[0].mxu0
        %2192 = vmatprep.mubr.bf16.mxu0 0
        %2193 = vmatmul.mubr.bf16.gmra.mrb[0].mxu0 %v2102
        %v2194 = vpop.f32.mrb[0].mxu0
        %v2195 = vadd.f32 0.0, %v2194
        %v2196 = vpop.f32.mrb[0].mxu0
        %v2197 = vpop.f32.mrb[0].mxu0
        %v2198 = vadd.f32 0.0, %v2197
        %v2199 = vpop.f32.mrb[0].mxu0
        %2200 = vdwg.mxu0
        %v2201 = vadd.f32 %v1990, %v2139
        %v2202 = vadd.f32 %v1993, %v2142
        %v2203 = vadd.f32 %v1998, %v2147
        %v2204 = vadd.f32 %v2001, %v2150
        %v2205 = vadd.f32 %v2006, %v2155
        %v2206 = vadd.f32 %v2009, %v2158
        %v2207 = vadd.f32 %v2014, %v2163
        %v2208 = vadd.f32 %v2017, %v2166
        %v2209 = vadd.f32 %v2022, %v2171
        %v2210 = vadd.f32 %v2025, %v2174
        %v2211 = vadd.f32 %v2030, %v2179
        %v2212 = vadd.f32 %v2033, %v2182
        %v2213 = vadd.f32 %v2038, %v2187
        %v2214 = vadd.f32 %v2041, %v2190
        %v2215 = vadd.f32 %v2046, %v2195
        %v2216 = vadd.f32 %v2049, %v2198
        %v2217 = vld [vmem:[%s8] sm:$0x1]
        %v2219 = vlaneseq
        %v2220 = vshrl.u32 %v2219, 7
        %v2221 = vsub.s32 0, %v2220
        %v2222 = vrot.slane %v2217, %v2221
        %v2224 = vmul.f32 %v2201, %v2222
        %v2225 = vmul.f32 %v2202, %v2222
        %v2226 = vmul.f32 %v2203, %v2222
        %v2227 = vmul.f32 %v2204, %v2222
        %v2228 = vmul.f32 %v2205, %v2222
        %v2229 = vmul.f32 %v2206, %v2222
        %v2230 = vmul.f32 %v2207, %v2222
        %v2231 = vmul.f32 %v2208, %v2222
        %v2232 = vmul.f32 %v2209, %v2222
        %v2233 = vmul.f32 %v2210, %v2222
        %v2234 = vmul.f32 %v2211, %v2222
        %v2235 = vmul.f32 %v2212, %v2222
        %v2236 = vmul.f32 %v2213, %v2222
        %v2237 = vmul.f32 %v2214, %v2222
        %v2238 = vmul.f32 %v2215, %v2222
        %v2239 = vmul.f32 %v2216, %v2222
        %v2240 = vld [vmem:[%s9] sm:$0x1]
        %v2242 = vlaneseq
        %v2243 = vshrl.u32 %v2242, 7
        %v2244 = vsub.s32 0, %v2243
        %v2245 = vrot.slane %v2240, %v2244
        %v2247 = vadd.f32 %v2224, %v2245
        %v2248 = vadd.f32 %v2225, %v2245
        %v2249 = vadd.f32 %v2226, %v2245
        %v2250 = vadd.f32 %v2227, %v2245
        %v2251 = vadd.f32 %v2228, %v2245
        %v2252 = vadd.f32 %v2229, %v2245
        %v2253 = vadd.f32 %v2230, %v2245
        %v2254 = vadd.f32 %v2231, %v2245
        %v2255 = vadd.f32 %v2232, %v2245
        %v2256 = vadd.f32 %v2233, %v2245
        %v2257 = vadd.f32 %v2234, %v2245
        %v2258 = vadd.f32 %v2235, %v2245
        %v2259 = vadd.f32 %v2236, %v2245
        %v2260 = vadd.f32 %v2237, %v2245
        %v2261 = vadd.f32 %v2238, %v2245
        %v2262 = vadd.f32 %v2239, %v2245
        %v2263 = vmax.f32 %v2247, 0.0
        %v2264 = vmax.f32 %v2248, 0.0
        %v2265 = vmax.f32 %v2249, 0.0
        %v2266 = vmax.f32 %v2250, 0.0
        %v2267 = vmax.f32 %v2251, 0.0
        %v2268 = vmax.f32 %v2252, 0.0
        %v2269 = vmax.f32 %v2253, 0.0
        %v2270 = vmax.f32 %v2254, 0.0
        %v2271 = vmax.f32 %v2255, 0.0
        %v2272 = vmax.f32 %v2256, 0.0
        %v2273 = vmax.f32 %v2257, 0.0
        %v2274 = vmax.f32 %v2258, 0.0
        %v2275 = vmax.f32 %v2259, 0.0
        %v2276 = vmax.f32 %v2260, 0.0
        %v2277 = vmax.f32 %v2261, 0.0
        %v2278 = vmax.f32 %v2262, 0.0
        %v2279 = vpack.c.bf16 %v2264, %v2263
        %v2280 = vpack.c.bf16 %v2266, %v2265
        %v2281 = vpack.c.bf16 %v2268, %v2267
        %v2282 = vpack.c.bf16 %v2270, %v2269
        %v2283 = vpack.c.bf16 %v2272, %v2271
        %v2284 = vpack.c.bf16 %v2274, %v2273
        %v2285 = vpack.c.bf16 %v2276, %v2275
        %v2286 = vpack.c.bf16 %v2278, %v2277
        %v2287 = vld [vmem:[%s5] sm:$0xf]
        %v2288 = vld [vmem:[%s5 + $0x4] sm:$0xf]
        %v2289 = vld [vmem:[%s5 + $0x8] sm:$0xf]
        %v2290 = vld [vmem:[%s5 + $0xc] sm:$0xf]
        %v2295 = vunpack.c.l.b16 %v2287
        %v2296 = vunpack.c.l.b16 %v2288
        %v2297 = vunpack.c.l.b16 %v2289
        %v2298 = vunpack.c.l.b16 %v2290
        %v2299 = vpack.c.b16 %v2296, %v2295
        %v2300 = vpack.c.b16 %v2298, %v2297
        %v2304 = vsel %vm1681, %v2279, 0
        %v2307 = vsel %vm1681, %v2280, 0
        %v2310 = vsel %vm1681, %v2281, 0
        %v2313 = vsel %vm1681, %v2282, 0
        %v2316 = vsel %vm1681, %v2283, 0
        %v2319 = vsel %vm1681, %v2284, 0
        %v2322 = vsel %vm1681, %v2285, 0
        %v2325 = vsel %vm1681, %v2286, 0
        %2327 = vmatprep.subr.bf16.mxu0 0
        %2328 = vmatpush1.bf16.msra.mxu0 %v2299
        %2329 = vmatprep.subr.bf16.mxu0 0
        %2330 = vmatpush1.bf16.msra.mxu0 %v2300
        %2331 = vmatprep.subr.bf16.mxu0 0
        %2332 = vmatpush1.bf16.msra.mxu0 0
        %2333 = vmatprep.subr.bf16.mxu0 0
        %2334 = vmatpush1.bf16.msra.mxu0 0
        %2335 = vmatprep.subr.bf16.mxu0 0
        %2336 = vmatpush1.bf16.msra.mxu0 0
        %2337 = vmatprep.subr.bf16.mxu0 0
        %2338 = vmatpush1.bf16.msra.mxu0 0
        %2339 = vmatprep.subr.bf16.mxu0 0
        %2340 = vmatpush1.bf16.msra.mxu0 0
        %2341 = vmatprep.subr.bf16.mxu0 0
        %2342 = vmatpush1.bf16.msra.mxu0 0
        %2343 = vmatprep.subr.bf16.mxu0 0
        %2344 = vmatpush1.bf16.msra.mxu0 0
        %2345 = vmatprep.subr.bf16.mxu0 0
        %2346 = vmatpush1.bf16.msra.mxu0 0
        %2347 = vmatprep.subr.bf16.mxu0 0
        %2348 = vmatpush1.bf16.msra.mxu0 0
        %2349 = vmatprep.subr.bf16.mxu0 0
        %2350 = vmatpush1.bf16.msra.mxu0 0
        %2351 = vmatprep.subr.bf16.mxu0 0
        %2352 = vmatpush1.bf16.msra.mxu0 0
        %2353 = vmatprep.subr.bf16.mxu0 0
        %2354 = vmatpush1.bf16.msra.mxu0 0
        %2355 = vmatprep.subr.bf16.mxu0 0
        %2356 = vmatpush1.bf16.msra.mxu0 0
        %2357 = vmatprep.subr.bf16.mxu0 0
        %2358 = vmatpush1.bf16.msra.mxu0 0
        %2359 = vmatprep.mubr.bf16.mxu0 0
        %2360 = vmatmul.mubr.bf16.gmra.mrb[0].mxu0 %v2304
        %v2361 = vpop.f32.mrb[0].mxu0
        %v2362 = vadd.f32 0.0, %v2361
        %v2363 = vpop.f32.mrb[0].mxu0
        %v2364 = vpop.f32.mrb[0].mxu0
        %v2365 = vadd.f32 0.0, %v2364
        %v2366 = vpop.f32.mrb[0].mxu0
        %2367 = vmatprep.mubr.bf16.mxu0 0
        %2368 = vmatmul.mubr.bf16.gmra.mrb[0].mxu0 %v2307
        %v2369 = vpop.f32.mrb[0].mxu0
        %v2370 = vadd.f32 0.0, %v2369
        %v2371 = vpop.f32.mrb[0].mxu0
        %v2372 = vpop.f32.mrb[0].mxu0
        %v2373 = vadd.f32 0.0, %v2372
        %v2374 = vpop.f32.mrb[0].mxu0
        %2375 = vmatprep.mubr.bf16.mxu0 0
        %2376 = vmatmul.mubr.bf16.gmra.mrb[0].mxu0 %v2310
        %v2377 = vpop.f32.mrb[0].mxu0
        %v2378 = vadd.f32 0.0, %v2377
        %v2379 = vpop.f32.mrb[0].mxu0
        %v2380 = vpop.f32.mrb[0].mxu0
        %v2381 = vadd.f32 0.0, %v2380
        %v2382 = vpop.f32.mrb[0].mxu0
        %2383 = vmatprep.mubr.bf16.mxu0 0
        %2384 = vmatmul.mubr.bf16.gmra.mrb[0].mxu0 %v2313
        %v2385 = vpop.f32.mrb[0].mxu0
        %v2386 = vadd.f32 0.0, %v2385
        %v2387 = vpop.f32.mrb[0].mxu0
        %v2388 = vpop.f32.mrb[0].mxu0
        %v2389 = vadd.f32 0.0, %v2388
        %v2390 = vpop.f32.mrb[0].mxu0
        %2391 = vmatprep.mubr.bf16.mxu0 0
        %2392 = vmatmul.mubr.bf16.gmra.mrb[0].mxu0 %v2316
        %v2393 = vpop.f32.mrb[0].mxu0
        %v2394 = vadd.f32 0.0, %v2393
        %v2395 = vpop.f32.mrb[0].mxu0
        %v2396 = vpop.f32.mrb[0].mxu0
        %v2397 = vadd.f32 0.0, %v2396
        %v2398 = vpop.f32.mrb[0].mxu0
        %2399 = vmatprep.mubr.bf16.mxu0 0
        %2400 = vmatmul.mubr.bf16.gmra.mrb[0].mxu0 %v2319
        %v2401 = vpop.f32.mrb[0].mxu0
        %v2402 = vadd.f32 0.0, %v2401
        %v2403 = vpop.f32.mrb[0].mxu0
        %v2404 = vpop.f32.mrb[0].mxu0
        %v2405 = vadd.f32 0.0, %v2404
        %v2406 = vpop.f32.mrb[0].mxu0
        %2407 = vmatprep.mubr.bf16.mxu0 0
        %2408 = vmatmul.mubr.bf16.gmra.mrb[0].mxu0 %v2322
        %v2409 = vpop.f32.mrb[0].mxu0
        %v2410 = vadd.f32 0.0, %v2409
        %v2411 = vpop.f32.mrb[0].mxu0
        %v2412 = vpop.f32.mrb[0].mxu0
        %v2413 = vadd.f32 0.0, %v2412
        %v2414 = vpop.f32.mrb[0].mxu0
        %2415 = vmatprep.mubr.bf16.mxu0 0
        %2416 = vmatmul.mubr.bf16.gmra.mrb[0].mxu0 %v2325
        %v2417 = vpop.f32.mrb[0].mxu0
        %v2418 = vadd.f32 0.0, %v2417
        %v2419 = vpop.f32.mrb[0].mxu0
        %v2420 = vpop.f32.mrb[0].mxu0
        %v2421 = vadd.f32 0.0, %v2420
        %v2422 = vpop.f32.mrb[0].mxu0
        %2423 = vdwg.mxu0
        %v2424 = vld [vmem:[%s10] sm:$0x1]
        %v2426 = vlaneseq
        %v2427 = vshrl.u32 %v2426, 7
        %v2428 = vsub.s32 0, %v2427
        %v2429 = vrot.slane %v2424, %v2428
        %v2431 = vmul.f32 %v2362, %v2429
        %v2432 = vmul.f32 %v2365, %v2429
        %v2433 = vmul.f32 %v2370, %v2429
        %v2434 = vmul.f32 %v2373, %v2429
        %v2435 = vmul.f32 %v2378, %v2429
        %v2436 = vmul.f32 %v2381, %v2429
        %v2437 = vmul.f32 %v2386, %v2429
        %v2438 = vmul.f32 %v2389, %v2429
        %v2439 = vmul.f32 %v2394, %v2429
        %v2440 = vmul.f32 %v2397, %v2429
        %v2441 = vmul.f32 %v2402, %v2429
        %v2442 = vmul.f32 %v2405, %v2429
        %v2443 = vmul.f32 %v2410, %v2429
        %v2444 = vmul.f32 %v2413, %v2429
        %v2445 = vmul.f32 %v2418, %v2429
        %v2446 = vmul.f32 %v2421, %v2429
        %v2447 = vld [vmem:[%s11] sm:$0x1]
        %v2449 = vlaneseq
        %v2450 = vshrl.u32 %v2449, 7
        %v2451 = vsub.s32 0, %v2450
        %v2452 = vrot.slane %v2447, %v2451
        %v2454 = vadd.f32 %v2431, %v2452
        %v2455 = vadd.f32 %v2432, %v2452
        %v2456 = vadd.f32 %v2433, %v2452
        %v2457 = vadd.f32 %v2434, %v2452
        %v2458 = vadd.f32 %v2435, %v2452
        %v2459 = vadd.f32 %v2436, %v2452
        %v2460 = vadd.f32 %v2437, %v2452
        %v2461 = vadd.f32 %v2438, %v2452
        %v2462 = vadd.f32 %v2439, %v2452
        %v2463 = vadd.f32 %v2440, %v2452
        %v2464 = vadd.f32 %v2441, %v2452
        %v2465 = vadd.f32 %v2442, %v2452
        %v2466 = vadd.f32 %v2443, %v2452
        %v2467 = vadd.f32 %v2444, %v2452
        %v2468 = vadd.f32 %v2445, %v2452
        %v2469 = vadd.f32 %v2446, %v2452
        %v2470 = vadd.f32 %v2454, %v571
        %v2471 = vadd.f32 %v2455, %v572
        %v2472 = vadd.f32 %v2456, %v573
        %v2473 = vadd.f32 %v2457, %v574
        %v2474 = vadd.f32 %v2458, %v575
        %v2475 = vadd.f32 %v2459, %v576
        %v2476 = vadd.f32 %v2460, %v577
        %v2477 = vadd.f32 %v2461, %v578
        %v2478 = vadd.f32 %v2462, %v579
        %v2479 = vadd.f32 %v2463, %v580
        %v2480 = vadd.f32 %v2464, %v581
        %v2481 = vadd.f32 %v2465, %v582
        %v2482 = vadd.f32 %v2466, %v583
        %v2483 = vadd.f32 %v2467, %v584
        %v2484 = vadd.f32 %v2468, %v585
        %v2485 = vadd.f32 %v2469, %v586
        %v2486 = vmax.f32 %v2470, 0.0
        %v2487 = vmax.f32 %v2471, 0.0
        %v2488 = vmax.f32 %v2472, 0.0
        %v2489 = vmax.f32 %v2473, 0.0
        %v2490 = vmax.f32 %v2474, 0.0
        %v2491 = vmax.f32 %v2475, 0.0
        %v2492 = vmax.f32 %v2476, 0.0
        %v2493 = vmax.f32 %v2477, 0.0
        %v2494 = vmax.f32 %v2478, 0.0
        %v2495 = vmax.f32 %v2479, 0.0
        %v2496 = vmax.f32 %v2480, 0.0
        %v2497 = vmax.f32 %v2481, 0.0
        %v2498 = vmax.f32 %v2482, 0.0
        %v2499 = vmax.f32 %v2483, 0.0
        %v2500 = vmax.f32 %v2484, 0.0
        %v2501 = vmax.f32 %v2485, 0.0
        %2502 = vst [vmem:[%s559] sm:$0xff] %v2486
        %2503 = vst [vmem:[%s559 + $0x8] sm:$0xff] %v2487
        %2504 = vst [vmem:[%s559 + $0x10] sm:$0xff] %v2488
        %2505 = vst [vmem:[%s559 + $0x18] sm:$0xff] %v2489
        %2506 = vst [vmem:[%s559 + $0x20] sm:$0xff] %v2490
        %2507 = vst [vmem:[%s559 + $0x28] sm:$0xff] %v2491
        %2508 = vst [vmem:[%s559 + $0x30] sm:$0xff] %v2492
        %2509 = vst [vmem:[%s559 + $0x38] sm:$0xff] %v2493
        %2510 = vst [vmem:[%s559 + $0x40] sm:$0xff] %v2494
        %2511 = vst [vmem:[%s559 + $0x48] sm:$0xff] %v2495
        %2512 = vst [vmem:[%s559 + $0x50] sm:$0xff] %v2496
        %2513 = vst [vmem:[%s559 + $0x58] sm:$0xff] %v2497
        %2514 = vst [vmem:[%s559 + $0x60] sm:$0xff] %v2498
        %2515 = vst [vmem:[%s559 + $0x68] sm:$0xff] %v2499
        %2516 = vst [vmem:[%s559 + $0x70] sm:$0xff] %v2500
        %2517 = vst [vmem:[%s559 + $0x78] sm:$0xff] %v2501
        %s2518 = sand.u32 %s343, 1
        %s2519 = scalar_lea.sflag [#allocation4], %s2518
        %s2520 = sand.u32 %s343, 1
        %s2521 = smul.addr %s2520, 128
        %s2522 = scalar_lea.vmem [#allocation8], %s2521
        // Predicated region
        $region81: #{tpu_custom_call.1} parent=67 // pred_check
          %p2523 = pneg %p353
        $region82: #{tpu_custom_call.1} parent=67 // pred_check_branch
          %2525 = sbr.rel (%p2523) target = $region84
        $region83: #{tpu_custom_call.1} parent=67 // pred_region
          %s2526 = smul.u32 8, %s37
          %s2528 = ssub.s32 2048, 2048
          %2529 = vsyncadd %s2519, %s2528
          %s2530 = smul.addr %s2526, 2
          %s2531 = smul.addr %s36, 32
          %s2532 = sadd.s32 %s2530, %s2531
          %s2533 = smul.addr %s2532, 128
          %s2534 = scalar_lea.hbm %s12, %s2533
          %s2535 = sshll.u32 %s2522, 4
          %s2536 = int_to_ptr.vmem [resolvable:$true] %s2535
          %2541 = dma.vmem_to_hbm [thread:$0]  %s2536, 2048, %s2534, %s2519, 128, 128, 8
        $region84: #{tpu_custom_call.1} parent=67 // pred_fallthru
          _
      $region68: #{tpu_custom_call.1} parent=5 // pred_fallthru
        _
      %p2542 = scmp.le.s32.totalorder 2, %s27
      // Predicated region
      $region85: #{tpu_custom_call.1} parent=5 // pred_check
        %p2543 = pneg %p2542
      $region86: #{tpu_custom_call.1} parent=5 // pred_check_branch
        %2545 = sbr.rel (%p2543) target = $region88
      $region87: #{tpu_custom_call.1} parent=5 // pred_region
        %s2546 = ssub.s32 %s27, 2
        // Predicated region
        $region89: #{tpu_custom_call.1} parent=87 // pred_check
          %p2547 = pneg %p359
        $region90: #{tpu_custom_call.1} parent=87 // pred_check_branch
          %2549 = sbr.rel (%p2547) target = $region92
        $region91: #{tpu_custom_call.1} parent=87 // pred_region
          %s2550 = sand.u32 %s344, 1
          %s2551 = scalar_lea.sflag [#allocation4], %s2550
          %s2552 = sand.u32 %s344, 1
          %s2553 = smul.addr %s2552, 128
          %s2554 = scalar_lea.vmem [#allocation8], %s2553
          %2555 = dma.done %s2551, 2048
        $region92: #{tpu_custom_call.1} parent=87 // pred_fallthru
          _
      $region88: #{tpu_custom_call.1} parent=5 // pred_fallthru
        _
    $region6: #{tpu_custom_call.1} parent=1 // loop_footer
      %s31 = sadd.s32 1, %s27
    $region7: #{tpu_custom_call.1} parent=1 // loop_footer_branch
      %26 = sbr.rel target = $region3
    $region8: #{tpu_custom_call.1} parent=1 // loop_exit
      _
    %2556 = vsyncpa [#allocation3], 1
    %s2557 = scalar_lea.sflag [#allocation3], 1
    %2558 = vsyncpa %s2557, 1
    %2559 = vsyncpa [#allocation6], 1
    %s2560 = scalar_lea.sflag [#allocation6], 1
    %2561 = vsyncpa %s2560, 1
    %2562 = vsyncpa [#allocation4], 1
    %s2563 = scalar_lea.sflag [#allocation4], 1
    %2564 = vsyncpa %s2563, 1

</llo_original>
